<compile_context>
chip_gen: v7x
topology: tpu7x:2x2x1
jax: 0.10.0
libtpu: 0.0.40
codegen_flags: <defaults>
</compile_context>

<pallas_src>
import functools

import jax
import jax.numpy as jnp
import numpy as np
from jax.experimental import pallas as pl
from jax.experimental.pallas import tpu as pltpu

LANE = 128


def _round_up(x, m=LANE):
    return ((x + m - 1) // m) * m


def _pad2d(a, rows, cols):
    return jnp.pad(a, ((0, rows - a.shape[0]), (0, cols - a.shape[1])))


def _sgn_kernel(
    senders_ref, recv_ref, cat_e_ref, cat_x_ref,
    we_e_ref, we_x_ref, be_ref,        # be already includes g @ We_g
    wn_a_ref, wn_x_ref, bn_ref,        # bn already includes g @ Wn_g
    wg_e_ref, wg_v_ref, bg_ref,        # bg already includes g @ Wg_g
    w2a_a_ref, w2a_v_ref, w2a_g_ref, b2a_ref,
    w2b_ref, b2b_ref,
    he_out_ref, hv_out_ref, g_out_ref,
):
    f32 = jnp.float32
    bf16 = jnp.bfloat16
    dot = functools.partial(jnp.dot, preferred_element_type=f32)

    E = cat_e_ref.shape[0]
    N = cat_x_ref.shape[0]

    cat_e = cat_e_ref[...]                                   # [E, De]
    cat_x = cat_x_ref[...]                                   # [N, Dx]

    # ---- gather / scatter one-hots built in-register from int32 indices ----
    # (no O(E*N) f32 arrays DMA'd from HBM; 0/1 are exact in bf16)
    node_en = jax.lax.broadcasted_iota(jnp.int32, (E, N), 1)
    s_oh = jnp.where(node_en == senders_ref[...], 1.0, 0.0).astype(bf16)   # [E, N]
    node_ne = jax.lax.broadcasted_iota(jnp.int32, (N, E), 0)
    rt_oh = jnp.where(node_ne == recv_ref[...], 1.0, 0.0).astype(bf16)     # [N, E]

    # ---- Edge block: h_e = ReLU([cat_e | cat_x[senders] | g] W + b) --------
    x_send = dot(s_oh, cat_x.astype(bf16))                   # gather, [E, Dx]
    he = jnp.maximum(
        dot(cat_e, we_e_ref[...]) + dot(x_send, we_x_ref[...]) + be_ref[...],
        0.0)                                                 # [E, Hp]

    # ---- Node block: received-edge sum aggregation + linear + ReLU ---------
    agg = dot(rt_oh, he.astype(bf16))                        # scatter-add, [N, Hp]
    hv = jnp.maximum(
        dot(agg, wn_a_ref[...]) + dot(cat_x, wn_x_ref[...]) + bn_ref[...],
        0.0)                                                 # [N, Hp]

    # ---- Global block: mean reducers over edges and nodes ------------------
    he_mean = jnp.mean(he, axis=0, keepdims=True)            # [1, Hp]
    hv_mean = jnp.mean(hv, axis=0, keepdims=True)            # [1, Hp]
    g_new = jnp.maximum(
        dot(he_mean, wg_e_ref[...]) + dot(hv_mean, wg_v_ref[...]) + bg_ref[...],
        0.0)                                                 # [1, Dgp]

    # ---- nb2: second node block (Linear, ReLU, Linear); reuses `agg` -------
    h2 = jnp.maximum(
        dot(agg, w2a_a_ref[...]) + dot(hv, w2a_v_ref[...])
        + dot(g_new, w2a_g_ref[...]) + b2a_ref[...],
        0.0)
    hv_out = dot(h2, w2b_ref[...]) + b2b_ref[...]            # [N, Dop]

    he_out_ref[...] = he
    hv_out_ref[...] = hv_out
    g_out_ref[...] = g_new


def sgn_forward(params, cat_e, cat_x, g, senders, receivers):
    """Runs the SGN forward pass. Returns (h_e, h_v_out, g_new)."""
    E, De = cat_e.shape
    N, Dx = cat_x.shape
    H = params["we_e"].shape[1]
    Dg = g.shape[1]
    Do = params["w2b"].shape[1]

    Hp, Dgp, Dop = _round_up(H), _round_up(Dg), _round_up(Do)

    # Fold the (row-broadcast) global terms into the biases and zero-pad all
    # output-feature dims to a full 128-lane width.  Padded lanes stay exactly
    # 0 through bias + ReLU, so the sliced results are exact.
    be = _pad2d(g @ params["we_g"] + params["be"], 1, Hp)
    bn = _pad2d(g @ params["wn_g"] + params["bn"], 1, Hp)
    bg = _pad2d(g @ params["wg_g"] + params["bg"], 1, Dgp)

    we_e = _pad2d(params["we_e"], De, Hp)
    we_x = _pad2d(params["we_x"], Dx, Hp)
    wn_a = _pad2d(params["wn_a"], Hp, Hp)
    wn_x = _pad2d(params["wn_x"], Dx, Hp)
    wg_e = _pad2d(params["wg_e"], Hp, Dgp)
    wg_v = _pad2d(params["wg_v"], Hp, Dgp)
    w2a_a = _pad2d(params["w2a_a"], Hp, Hp)
    w2a_v = _pad2d(params["w2a_v"], Hp, Hp)
    w2a_g = _pad2d(params["w2a_g"], Dgp, Hp)
    b2a = _pad2d(params["b2a"], 1, Hp)
    w2b = _pad2d(params["w2b"], Hp, Dop)
    b2b = _pad2d(params["b2b"], 1, Dop)

    senders_col = jnp.asarray(senders, jnp.int32).reshape(E, 1)
    receivers_row = jnp.asarray(receivers, jnp.int32).reshape(1, E)

    inputs = (
        senders_col, receivers_row, cat_e, cat_x,
        we_e, we_x, be,
        wn_a, wn_x, bn,
        wg_e, wg_v, bg,
        w2a_a, w2a_v, w2a_g, b2a,
        w2b, b2b,
    )

    vmem = pl.BlockSpec(memory_space=pltpu.MemorySpace.VMEM)
    out_shape = (
        jax.ShapeDtypeStruct((E, Hp), jnp.float32),   # h_e (lane-padded)
        jax.ShapeDtypeStruct((N, Dop), jnp.float32),  # h_v final (lane-padded)
        jax.ShapeDtypeStruct((1, Dgp), jnp.float32),  # updated global (lane-padded)
    )

    he_p, hv_p, g_p = pl.pallas_call(
        _sgn_kernel,
        out_shape=out_shape,
        in_specs=[vmem] * len(inputs),
        out_specs=(vmem, vmem, vmem),
        compiler_params=pltpu.CompilerParams(vmem_limit_bytes=32 * 1024 * 1024),
    )(*inputs)

    return he_p[:, :H], hv_p[:, :Do], g_p[:, :Dg]


def _reference(params, cat_e, cat_x, g, senders, receivers):
    """Pure-JAX f32 reference (same math, no Pallas) for verification."""
    N = cat_x.shape[0]
    x_send = cat_x[senders]
    he = jax.nn.relu(cat_e @ params["we_e"] + x_send @ params["we_x"]
                     + g @ params["we_g"] + params["be"])
    agg = jax.ops.segment_sum(he, receivers, num_segments=N)
    hv = jax.nn.relu(agg @ params["wn_a"] + cat_x @ params["wn_x"]
                     + g @ params["wn_g"] + params["bn"])
    g_new = jax.nn.relu(he.mean(0, keepdims=True) @ params["wg_e"]
                        + hv.mean(0, keepdims=True) @ params["wg_v"]
                        + g @ params["wg_g"] + params["bg"])
    h2 = jax.nn.relu(agg @ params["w2a_a"] + hv @ params["w2a_v"]
                     + g_new @ params["w2a_g"] + params["b2a"])
    hv_out = h2 @ params["w2b"] + params["b2b"]
    return he, hv_out, g_new


def make_params(key, input_edge_dim, input_node_dim, sgn_global_dim,
                sgn_hidden_dim, rgn_hidden_dim, output_node_dim):
    De = input_edge_dim + rgn_hidden_dim      # 'cat_e' width
    Dx = input_node_dim + rgn_hidden_dim      # 'cat_x' width
    Dg = sgn_global_dim
    H = sgn_hidden_dim
    Do = output_node_dim

    shapes = dict(
        we_e=(De, H), we_x=(Dx, H), we_g=(Dg, H), be=(1, H),
        wn_a=(H, H), wn_x=(Dx, H), wn_g=(Dg, H), bn=(1, H),
        wg_e=(H, Dg), wg_v=(H, Dg), wg_g=(Dg, Dg), bg=(1, Dg),
        w2a_a=(H, H), w2a_v=(H, H), w2a_g=(Dg, H), b2a=(1, H),
        w2b=(H, Do), b2b=(1, Do),
    )
    params = {}
    for name, shape in sorted(shapes.items()):
        key, sub = jax.random.split(key)
        params[name] = 0.1 * jax.random.normal(sub, shape, jnp.float32)
    return params


if __name__ == "__main__":
    # Small, deterministic example consistent with the module's __init__ dims.
    input_edge_dim, input_node_dim = 4, 6
    sgn_global_dim, sgn_hidden_dim = 8, 16
    rgn_hidden_dim, output_node_dim = 5, 3
    N, E = 8, 16  # nodes, edges

    key = jax.random.PRNGKey(0)
    params = make_params(key, input_edge_dim, input_node_dim, sgn_global_dim,
                         sgn_hidden_dim, rgn_hidden_dim, output_node_dim)

    k1, k2, k3 = jax.random.split(jax.random.PRNGKey(0), 3)
    cat_e = jax.random.normal(k1, (E, input_edge_dim + rgn_hidden_dim), jnp.float32)
    cat_x = jax.random.normal(k2, (N, input_node_dim + rgn_hidden_dim), jnp.float32)
    g = jax.random.normal(k3, (1, sgn_global_dim), jnp.float32)
    senders = jnp.arange(E, dtype=jnp.int32) % N
    receivers = (3 * jnp.arange(E, dtype=jnp.int32) + 1) % N

    he, hv_out, g_new = jax.block_until_ready(
        sgn_forward(params, cat_e, cat_x, g, senders, receivers))

    # Gather/scatter MXU operands run in bf16 (f32 accumulation), so compare
    # against the f32 reference with bf16-level tolerances.
    he_r, hv_r, g_r = _reference(params, cat_e, cat_x, g, senders, receivers)
    np.testing.assert_allclose(np.asarray(he), np.asarray(he_r), rtol=2e-2, atol=2e-2)
    np.testing.assert_allclose(np.asarray(hv_out), np.asarray(hv_r), rtol=2e-2, atol=2e-2)
    np.testing.assert_allclose(np.asarray(g_new), np.asarray(g_r), rtol=2e-2, atol=2e-2)

    print("KERNEL_OK")
</pallas_src>

<mosaic_0001>
module attributes {stable_mosaic.version = 11 : i64} {
  func.func @_sgn_kernel(%arg0: memref<16x1xi32, #tpu.memory_space<vmem>>, %arg1: memref<1x16xi32, #tpu.memory_space<vmem>>, %arg2: memref<16x9xf32, #tpu.memory_space<vmem>>, %arg3: memref<8x11xf32, #tpu.memory_space<vmem>>, %arg4: memref<9x128xf32, #tpu.memory_space<vmem>>, %arg5: memref<11x128xf32, #tpu.memory_space<vmem>>, %arg6: memref<1x128xf32, #tpu.memory_space<vmem>>, %arg7: memref<128x128xf32, #tpu.memory_space<vmem>>, %arg8: memref<11x128xf32, #tpu.memory_space<vmem>>, %arg9: memref<1x128xf32, #tpu.memory_space<vmem>>, %arg10: memref<128x128xf32, #tpu.memory_space<vmem>>, %arg11: memref<128x128xf32, #tpu.memory_space<vmem>>, %arg12: memref<1x128xf32, #tpu.memory_space<vmem>>, %arg13: memref<128x128xf32, #tpu.memory_space<vmem>>, %arg14: memref<128x128xf32, #tpu.memory_space<vmem>>, %arg15: memref<128x128xf32, #tpu.memory_space<vmem>>, %arg16: memref<1x128xf32, #tpu.memory_space<vmem>>, %arg17: memref<128x128xf32, #tpu.memory_space<vmem>>, %arg18: memref<1x128xf32, #tpu.memory_space<vmem>>, %arg19: memref<16x128xf32, #tpu.memory_space<vmem>>, %arg20: memref<8x128xf32, #tpu.memory_space<vmem>>, %arg21: memref<1x128xf32, #tpu.memory_space<vmem>>) attributes {dimension_semantics = [], scalar_prefetch = 0 : i64, scratch_operands = 0 : i64, tpu.core_type = #tpu.core_type<tc>} {
    %c0 = arith.constant 0 : index
    %c0_0 = arith.constant 0 : index
    %0 = vector.load %arg2[%c0, %c0_0] : memref<16x9xf32, #tpu.memory_space<vmem>>, vector<16x9xf32>
    %c0_1 = arith.constant 0 : index
    %c0_2 = arith.constant 0 : index
    %1 = vector.load %arg3[%c0_1, %c0_2] : memref<8x11xf32, #tpu.memory_space<vmem>>, vector<8x11xf32>
    %2 = tpu.iota {dimensions = array<i32: 1>} : vector<16x8xi32>
    %c0_3 = arith.constant 0 : index
    %c0_4 = arith.constant 0 : index
    %3 = vector.load %arg0[%c0_3, %c0_4] : memref<16x1xi32, #tpu.memory_space<vmem>>, vector<16x1xi32>
    %4 = vector.broadcast %3 : vector<16x1xi32> to vector<16x8xi32>
    %5 = arith.cmpi eq, %2, %4 : vector<16x8xi32>
    %cst = arith.constant 1.000000e+00 : f32
    %cst_5 = arith.constant 0.000000e+00 : f32
    %6 = vector.broadcast %cst : f32 to vector<16x8xf32>
    %7 = vector.broadcast %cst_5 : f32 to vector<16x8xf32>
    %8 = arith.select %5, %6, %7 : vector<16x8xi1>, vector<16x8xf32>
    %9 = arith.truncf %8 : vector<16x8xf32> to vector<16x8xbf16>
    %10 = tpu.iota {dimensions = array<i32: 0>} : vector<8x16xi32>
    %c0_6 = arith.constant 0 : index
    %c0_7 = arith.constant 0 : index
    %11 = vector.load %arg1[%c0_6, %c0_7] : memref<1x16xi32, #tpu.memory_space<vmem>>, vector<1x16xi32>
    %12 = vector.broadcast %11 : vector<1x16xi32> to vector<8x16xi32>
    %13 = arith.cmpi eq, %10, %12 : vector<8x16xi32>
    %cst_8 = arith.constant 1.000000e+00 : f32
    %cst_9 = arith.constant 0.000000e+00 : f32
    %14 = vector.broadcast %cst_8 : f32 to vector<8x16xf32>
    %15 = vector.broadcast %cst_9 : f32 to vector<8x16xf32>
    %16 = arith.select %13, %14, %15 : vector<8x16xi1>, vector<8x16xf32>
    %17 = arith.truncf %16 : vector<8x16xf32> to vector<8x16xbf16>
    %18 = arith.truncf %1 : vector<8x11xf32> to vector<8x11xbf16>
    %cst_10 = arith.constant dense<0.000000e+00> : vector<16x11xf32>
    %19 = tpu.matmul %9, %18, %cst_10 {dimension_numbers = #tpu.dot_dimension_numbers<[1], [0], [0], [1], [0, 0, 1, 1], [], []>} : vector<16x8xbf16>, vector<8x11xbf16>, vector<16x11xf32> -> vector<16x11xf32>
    %c0_11 = arith.constant 0 : index
    %c0_12 = arith.constant 0 : index
    %20 = vector.load %arg4[%c0_11, %c0_12] : memref<9x128xf32, #tpu.memory_space<vmem>>, vector<9x128xf32>
    %cst_13 = arith.constant dense<0.000000e+00> : vector<16x128xf32>
    %21 = tpu.matmul %0, %20, %cst_13 {dimension_numbers = #tpu.dot_dimension_numbers<[1], [0], [0], [1], [0, 0, 1, 1], [], []>} : vector<16x9xf32>, vector<9x128xf32>, vector<16x128xf32> -> vector<16x128xf32>
    %c0_14 = arith.constant 0 : index
    %c0_15 = arith.constant 0 : index
    %22 = vector.load %arg5[%c0_14, %c0_15] : memref<11x128xf32, #tpu.memory_space<vmem>>, vector<11x128xf32>
    %cst_16 = arith.constant dense<0.000000e+00> : vector<16x128xf32>
    %23 = tpu.matmul %19, %22, %cst_16 {dimension_numbers = #tpu.dot_dimension_numbers<[1], [0], [0], [1], [0, 0, 1, 1], [], []>} : vector<16x11xf32>, vector<11x128xf32>, vector<16x128xf32> -> vector<16x128xf32>
    %24 = arith.addf %21, %23 : vector<16x128xf32>
    %c0_17 = arith.constant 0 : index
    %c0_18 = arith.constant 0 : index
    %25 = vector.load %arg6[%c0_17, %c0_18] : memref<1x128xf32, #tpu.memory_space<vmem>>, vector<1x128xf32>
    %26 = vector.broadcast %25 : vector<1x128xf32> to vector<16x128xf32>
    %27 = arith.addf %24, %26 : vector<16x128xf32>
    %cst_19 = arith.constant 0.000000e+00 : f32
    %28 = vector.broadcast %cst_19 : f32 to vector<16x128xf32>
    %29 = arith.maximumf %27, %28 : vector<16x128xf32>
    %30 = arith.truncf %29 : vector<16x128xf32> to vector<16x128xbf16>
    %cst_20 = arith.constant dense<0.000000e+00> : vector<8x128xf32>
    %31 = tpu.matmul %17, %30, %cst_20 {dimension_numbers = #tpu.dot_dimension_numbers<[1], [0], [0], [1], [0, 0, 1, 1], [], []>} : vector<8x16xbf16>, vector<16x128xbf16>, vector<8x128xf32> -> vector<8x128xf32>
    %c0_21 = arith.constant 0 : index
    %c0_22 = arith.constant 0 : index
    %32 = vector.load %arg7[%c0_21, %c0_22] : memref<128x128xf32, #tpu.memory_space<vmem>>, vector<128x128xf32>
    %cst_23 = arith.constant dense<0.000000e+00> : vector<8x128xf32>
    %33 = tpu.matmul %31, %32, %cst_23 {dimension_numbers = #tpu.dot_dimension_numbers<[1], [0], [0], [1], [0, 0, 1, 1], [], []>} : vector<8x128xf32>, vector<128x128xf32>, vector<8x128xf32> -> vector<8x128xf32>
    %c0_24 = arith.constant 0 : index
    %c0_25 = arith.constant 0 : index
    %34 = vector.load %arg8[%c0_24, %c0_25] : memref<11x128xf32, #tpu.memory_space<vmem>>, vector<11x128xf32>
    %cst_26 = arith.constant dense<0.000000e+00> : vector<8x128xf32>
    %35 = tpu.matmul %1, %34, %cst_26 {dimension_numbers = #tpu.dot_dimension_numbers<[1], [0], [0], [1], [0, 0, 1, 1], [], []>} : vector<8x11xf32>, vector<11x128xf32>, vector<8x128xf32> -> vector<8x128xf32>
    %36 = arith.addf %33, %35 : vector<8x128xf32>
    %c0_27 = arith.constant 0 : index
    %c0_28 = arith.constant 0 : index
    %37 = vector.load %arg9[%c0_27, %c0_28] : memref<1x128xf32, #tpu.memory_space<vmem>>, vector<1x128xf32>
    %38 = vector.broadcast %37 : vector<1x128xf32> to vector<8x128xf32>
    %39 = arith.addf %36, %38 : vector<8x128xf32>
    %cst_29 = arith.constant 0.000000e+00 : f32
    %40 = vector.broadcast %cst_29 : f32 to vector<8x128xf32>
    %41 = arith.maximumf %39, %40 : vector<8x128xf32>
    %cst_30 = arith.constant dense<0.000000e+00> : vector<128xf32>
    %42 = vector.multi_reduction <add>, %29, %cst_30 [0] : vector<16x128xf32> to vector<128xf32>
    %43 = vector.shape_cast %42 : vector<128xf32> to vector<1x128xf32>
    %cst_31 = arith.constant 1.600000e+01 : f32
    %44 = vector.broadcast %cst_31 : f32 to vector<1x128xf32>
    %45 = arith.divf %43, %44 : vector<1x128xf32>
    %cst_32 = arith.constant dense<0.000000e+00> : vector<128xf32>
    %46 = vector.multi_reduction <add>, %41, %cst_32 [0] : vector<8x128xf32> to vector<128xf32>
    %47 = vector.shape_cast %46 : vector<128xf32> to vector<1x128xf32>
    %cst_33 = arith.constant 8.000000e+00 : f32
    %48 = vector.broadcast %cst_33 : f32 to vector<1x128xf32>
    %49 = arith.divf %47, %48 : vector<1x128xf32>
    %c0_34 = arith.constant 0 : index
    %c0_35 = arith.constant 0 : index
    %50 = vector.load %arg10[%c0_34, %c0_35] : memref<128x128xf32, #tpu.memory_space<vmem>>, vector<128x128xf32>
    %cst_36 = arith.constant dense<0.000000e+00> : vector<1x128xf32>
    %51 = tpu.matmul %45, %50, %cst_36 {dimension_numbers = #tpu.dot_dimension_numbers<[1], [0], [0], [1], [0, 0, 1, 1], [], []>} : vector<1x128xf32>, vector<128x128xf32>, vector<1x128xf32> -> vector<1x128xf32>
    %c0_37 = arith.constant 0 : index
    %c0_38 = arith.constant 0 : index
    %52 = vector.load %arg11[%c0_37, %c0_38] : memref<128x128xf32, #tpu.memory_space<vmem>>, vector<128x128xf32>
    %cst_39 = arith.constant dense<0.000000e+00> : vector<1x128xf32>
    %53 = tpu.matmul %49, %52, %cst_39 {dimension_numbers = #tpu.dot_dimension_numbers<[1], [0], [0], [1], [0, 0, 1, 1], [], []>} : vector<1x128xf32>, vector<128x128xf32>, vector<1x128xf32> -> vector<1x128xf32>
    %54 = arith.addf %51, %53 : vector<1x128xf32>
    %c0_40 = arith.constant 0 : index
    %c0_41 = arith.constant 0 : index
    %55 = vector.load %arg12[%c0_40, %c0_41] : memref<1x128xf32, #tpu.memory_space<vmem>>, vector<1x128xf32>
    %56 = arith.addf %54, %55 : vector<1x128xf32>
    %cst_42 = arith.constant 0.000000e+00 : f32
    %57 = vector.broadcast %cst_42 : f32 to vector<1x128xf32>
    %58 = arith.maximumf %56, %57 : vector<1x128xf32>
    %c0_43 = arith.constant 0 : index
    %c0_44 = arith.constant 0 : index
    %59 = vector.load %arg13[%c0_43, %c0_44] : memref<128x128xf32, #tpu.memory_space<vmem>>, vector<128x128xf32>
    %cst_45 = arith.constant dense<0.000000e+00> : vector<8x128xf32>
    %60 = tpu.matmul %31, %59, %cst_45 {dimension_numbers = #tpu.dot_dimension_numbers<[1], [0], [0], [1], [0, 0, 1, 1], [], []>} : vector<8x128xf32>, vector<128x128xf32>, vector<8x128xf32> -> vector<8x128xf32>
    %c0_46 = arith.constant 0 : index
    %c0_47 = arith.constant 0 : index
    %61 = vector.load %arg14[%c0_46, %c0_47] : memref<128x128xf32, #tpu.memory_space<vmem>>, vector<128x128xf32>
    %cst_48 = arith.constant dense<0.000000e+00> : vector<8x128xf32>
    %62 = tpu.matmul %41, %61, %cst_48 {dimension_numbers = #tpu.dot_dimension_numbers<[1], [0], [0], [1], [0, 0, 1, 1], [], []>} : vector<8x128xf32>, vector<128x128xf32>, vector<8x128xf32> -> vector<8x128xf32>
    %63 = arith.addf %60, %62 : vector<8x128xf32>
    %c0_49 = arith.constant 0 : index
    %c0_50 = arith.constant 0 : index
    %64 = vector.load %arg15[%c0_49, %c0_50] : memref<128x128xf32, #tpu.memory_space<vmem>>, vector<128x128xf32>
    %cst_51 = arith.constant dense<0.000000e+00> : vector<1x128xf32>
    %65 = tpu.matmul %58, %64, %cst_51 {dimension_numbers = #tpu.dot_dimension_numbers<[1], [0], [0], [1], [0, 0, 1, 1], [], []>} : vector<1x128xf32>, vector<128x128xf32>, vector<1x128xf32> -> vector<1x128xf32>
    %66 = vector.broadcast %65 : vector<1x128xf32> to vector<8x128xf32>
    %67 = arith.addf %63, %66 : vector<8x128xf32>
    %c0_52 = arith.constant 0 : index
    %c0_53 = arith.constant 0 : index
    %68 = vector.load %arg16[%c0_52, %c0_53] : memref<1x128xf32, #tpu.memory_space<vmem>>, vector<1x128xf32>
    %69 = vector.broadcast %68 : vector<1x128xf32> to vector<8x128xf32>
    %70 = arith.addf %67, %69 : vector<8x128xf32>
    %cst_54 = arith.constant 0.000000e+00 : f32
    %71 = vector.broadcast %cst_54 : f32 to vector<8x128xf32>
    %72 = arith.maximumf %70, %71 : vector<8x128xf32>
    %c0_55 = arith.constant 0 : index
    %c0_56 = arith.constant 0 : index
    %73 = vector.load %arg17[%c0_55, %c0_56] : memref<128x128xf32, #tpu.memory_space<vmem>>, vector<128x128xf32>
    %cst_57 = arith.constant dense<0.000000e+00> : vector<8x128xf32>
    %74 = tpu.matmul %72, %73, %cst_57 {dimension_numbers = #tpu.dot_dimension_numbers<[1], [0], [0], [1], [0, 0, 1, 1], [], []>} : vector<8x128xf32>, vector<128x128xf32>, vector<8x128xf32> -> vector<8x128xf32>
    %c0_58 = arith.constant 0 : index
    %c0_59 = arith.constant 0 : index
    %75 = vector.load %arg18[%c0_58, %c0_59] : memref<1x128xf32, #tpu.memory_space<vmem>>, vector<1x128xf32>
    %76 = vector.broadcast %75 : vector<1x128xf32> to vector<8x128xf32>
    %77 = arith.addf %74, %76 : vector<8x128xf32>
    %c0_60 = arith.constant 0 : index
    %c0_61 = arith.constant 0 : index
    %78 = vector.load %arg19[%c0_60, %c0_61] : memref<16x128xf32, #tpu.memory_space<vmem>>, vector<16x128xf32>
    tpu.vector_store %arg19[%c0_60, %c0_61], %29 {strides = array<i32>} : memref<16x128xf32, #tpu.memory_space<vmem>>, vector<16x128xf32>,
    %c0_62 = arith.constant 0 : index
    %c0_63 = arith.constant 0 : index
    %79 = vector.load %arg20[%c0_62, %c0_63] : memref<8x128xf32, #tpu.memory_space<vmem>>, vector<8x128xf32>
    tpu.vector_store %arg20[%c0_62, %c0_63], %77 {strides = array<i32>} : memref<8x128xf32, #tpu.memory_space<vmem>>, vector<8x128xf32>,
    %c0_64 = arith.constant 0 : index
    %c0_65 = arith.constant 0 : index
    %80 = vector.load %arg21[%c0_64, %c0_65] : memref<1x128xf32, #tpu.memory_space<vmem>>, vector<1x128xf32>
    tpu.vector_store %arg21[%c0_64, %c0_65], %58 {strides = array<i32>} : memref<1x128xf32, #tpu.memory_space<vmem>>, vector<1x128xf32>,
    return
  }
}

</mosaic_0001>

<llo_original>
// kernel: tpu_custom_call.1
$region0: #{tpu_custom_call.1}
  #allocation0 [shape = 'u32[]', space=smem, size = 0x4, offset = 0x4, fixed_abs, tag = 'smem constant byte address 0x4 - core index']
  #allocation1 [shape = 'u32[144,128]{1,0:T(1,128)}', space=vmem, size = 0x12000, scoped, tag = 'internal scratch']
  %s0 = inlined_call_operand.vmem [shape: s32[16,1], index: 0, kind: input, shape index: {}]
  %s1 = inlined_call_operand.hbm [shape: s32[1,16], index: 1, kind: input, shape index: {}]
  %s2 = inlined_call_operand.vmem [shape: f32[16,9], index: 2, kind: input, shape index: {}]
  %s3 = inlined_call_operand.hbm [shape: f32[8,11], index: 3, kind: input, shape index: {}]
  %s4 = inlined_call_operand.vmem [shape: f32[9,128], index: 4, kind: input, shape index: {}]
  %s5 = inlined_call_operand.hbm [shape: f32[11,128], index: 5, kind: input, shape index: {}]
  %s6 = inlined_call_operand.vmem [shape: f32[1,128], index: 6, kind: input, shape index: {}]
  %s7 = inlined_call_operand.hbm [shape: f32[128,128], index: 7, kind: input, shape index: {}]
  %s8 = inlined_call_operand.hbm [shape: f32[11,128], index: 8, kind: input, shape index: {}]
  %s9 = inlined_call_operand.vmem [shape: f32[1,128], index: 9, kind: input, shape index: {}]
  %s10 = inlined_call_operand.hbm [shape: f32[128,128], index: 10, kind: input, shape index: {}]
  %s11 = inlined_call_operand.hbm [shape: f32[128,128], index: 11, kind: input, shape index: {}]
  %s12 = inlined_call_operand.vmem [shape: f32[1,128], index: 12, kind: input, shape index: {}]
  %s13 = inlined_call_operand.hbm [shape: f32[128,128], index: 13, kind: input, shape index: {}]
  %s14 = inlined_call_operand.hbm [shape: f32[128,128], index: 14, kind: input, shape index: {}]
  %s15 = inlined_call_operand.hbm [shape: f32[128,128], index: 15, kind: input, shape index: {}]
  %s16 = inlined_call_operand.vmem [shape: f32[1,128], index: 16, kind: input, shape index: {}]
  %s17 = inlined_call_operand.hbm [shape: f32[128,128], index: 17, kind: input, shape index: {}]
  %s18 = inlined_call_operand.vmem [shape: f32[1,128], index: 18, kind: input, shape index: {}]
  %s19 = inlined_call_operand.hbm [shape: f32[16,128], index: 19, kind: output, shape index: {0}]
  %s20 = inlined_call_operand.hbm [shape: f32[8,128], index: 20, kind: output, shape index: {1}]
  %s21 = inlined_call_operand.hbm [shape: f32[1,128], index: 21, kind: output, shape index: {2}]
  %22 = xla_tuple %s19, %s20, %s21
  %s23 = sld [smem:[#allocation0]]
  $region146: #{tpu_custom_call.1} parent=0
    _
  %s25 = ssub.s32 1, %s23
  %s26 = scalar_select 0, %s25, %s23
  $region1: #{tpu_custom_call.1} parent=0
    #allocation2 [shape = 'u8[512]{0}', space=vmem, size = 0x400, scoped, tag = 'input window, operand 1, single buffered']
    #allocation3 [shape = 's32[1]{0}', space=sflag, size = 0x4, scoped, tag = 'scoped memory for tpu_custom_call.1']
    #allocation4 [shape = 's32[1]{0}', space=sflag, size = 0x4, scoped, tag = 'scoped memory for tpu_custom_call.1']
    #allocation5 [shape = 'u8[4096]{0}', space=vmem, size = 0x1000, scoped, tag = 'input window, operand 3, single buffered']
    #allocation6 [shape = 's32[1]{0}', space=sflag, size = 0x4, scoped, tag = 'scoped memory for tpu_custom_call.1']
    #allocation7 [shape = 'u8[8192]{0}', space=vmem, size = 0x2000, scoped, tag = 'input window, operand 5, single buffered']
    #allocation8 [shape = 'u8[65536]{0}', space=vmem, size = 0x10000, scoped, tag = 'input window, operand 7, single buffered']
    #allocation9 [shape = 's32[1]{0}', space=sflag, size = 0x4, scoped, tag = 'scoped memory for tpu_custom_call.1']
    #allocation10 [shape = 'u8[8192]{0}', space=vmem, size = 0x2000, scoped, tag = 'input window, operand 8, single buffered']
    #allocation11 [shape = 'u8[65536]{0}', space=vmem, size = 0x10000, scoped, tag = 'input window, operand 10, single buffered']
    #allocation12 [shape = 's32[1]{0}', space=sflag, size = 0x4, scoped, tag = 'scoped memory for tpu_custom_call.1']
    #allocation13 [shape = 'u8[65536]{0}', space=vmem, size = 0x10000, scoped, tag = 'input window, operand 11, single buffered']
    #allocation14 [shape = 'u8[65536]{0}', space=vmem, size = 0x10000, scoped, tag = 'input window, operand 13, single buffered']
    #allocation15 [shape = 's32[1]{0}', space=sflag, size = 0x4, scoped, tag = 'scoped memory for tpu_custom_call.1']
    #allocation16 [shape = 'u8[65536]{0}', space=vmem, size = 0x10000, scoped, tag = 'input window, operand 14, single buffered']
    #allocation17 [shape = 'u8[65536]{0}', space=vmem, size = 0x10000, scoped, tag = 'input window, operand 15, single buffered']
    #allocation18 [shape = 's32[1]{0}', space=sflag, size = 0x4, scoped, tag = 'scoped memory for tpu_custom_call.1']
    #allocation19 [shape = 'u8[65536]{0}', space=vmem, size = 0x10000, scoped, tag = 'input window, operand 17, single buffered']
    #allocation20 [shape = 'u8[8192]{0}', space=vmem, size = 0x2000, scoped, tag = 'output window, operand 0, single buffered']
    #allocation21 [shape = 'u8[4096]{0}', space=vmem, size = 0x1000, scoped, tag = 'output window, operand 1, single buffered']
    #allocation22 [shape = 's32[1]{0}', space=sflag, size = 0x4, scoped, tag = 'scoped memory for tpu_custom_call.1']
    #allocation23 [shape = 'u8[512]{0}', space=vmem, size = 0x400, scoped, tag = 'output window, operand 2, single buffered']
    %27 = vsyncpa [#allocation3], 0
    %28 = vsyncpa [#allocation6], 0
    %29 = vsyncpa [#allocation9], 0
    %30 = vsyncpa [#allocation12], 0
    %31 = vsyncpa [#allocation15], 0
    %32 = vsyncpa [#allocation18], 0
    %33 = vsyncpa [#allocation4], 0
    %34 = vsyncpa [#allocation22], 0
    // Predicated region
    $region2: #{tpu_custom_call.1} parent=1 // pred_check
      _
    $region3: #{tpu_custom_call.1} parent=1 // pred_check_branch
      %36 = sbr.rel (0) target = $region5
    $region4: #{tpu_custom_call.1} parent=1 // pred_region
      _
    $region5: #{tpu_custom_call.1} parent=1 // pred_fallthru
      _
    // Predicated region
    $region6: #{tpu_custom_call.1} parent=1 // pred_check
      _
    $region7: #{tpu_custom_call.1} parent=1 // pred_check_branch
      %38 = sbr.rel (0) target = $region9
    $region8: #{tpu_custom_call.1} parent=1 // pred_region
      %s40 = ssub.s32 16, 16
      %41 = vsyncadd [#allocation3], %s40
      %s43 = sshll.u32 [#allocation2], 4
      %s44 = int_to_ptr.vmem [resolvable:$true] %s43
      %46 = dma.hbm_to_vmem [thread:$0]  %s1, 16, %s44, [#allocation3]
    $region9: #{tpu_custom_call.1} parent=1 // pred_fallthru
      _
    // Predicated region
    $region10: #{tpu_custom_call.1} parent=1 // pred_check
      _
    $region11: #{tpu_custom_call.1} parent=1 // pred_check_branch
      %48 = sbr.rel (0) target = $region13
    $region12: #{tpu_custom_call.1} parent=1 // pred_region
      _
    $region13: #{tpu_custom_call.1} parent=1 // pred_fallthru
      _
    // Predicated region
    $region14: #{tpu_custom_call.1} parent=1 // pred_check
      _
    $region15: #{tpu_custom_call.1} parent=1 // pred_check_branch
      %50 = sbr.rel (0) target = $region17
    $region16: #{tpu_custom_call.1} parent=1 // pred_region
      %s52 = ssub.s32 128, 128
      %53 = vsyncadd [#allocation6], %s52
      %s55 = sshll.u32 [#allocation5], 4
      %s56 = int_to_ptr.vmem [resolvable:$true] %s55
      %58 = dma.hbm_to_vmem [thread:$0]  %s3, 128, %s56, [#allocation6]
    $region17: #{tpu_custom_call.1} parent=1 // pred_fallthru
      _
    // Predicated region
    $region18: #{tpu_custom_call.1} parent=1 // pred_check
      _
    $region19: #{tpu_custom_call.1} parent=1 // pred_check_branch
      %60 = sbr.rel (0) target = $region21
    $region20: #{tpu_custom_call.1} parent=1 // pred_region
      _
    $region21: #{tpu_custom_call.1} parent=1 // pred_fallthru
      _
    // Predicated region
    $region22: #{tpu_custom_call.1} parent=1 // pred_check
      _
    $region23: #{tpu_custom_call.1} parent=1 // pred_check_branch
      %62 = sbr.rel (0) target = $region25
    $region24: #{tpu_custom_call.1} parent=1 // pred_region
      %s64 = ssub.s32 256, 256
      %65 = vsyncadd [#allocation6], %s64
      %s66 = sshll.u32 [#allocation7], 4
      %s67 = int_to_ptr.vmem [resolvable:$true] %s66
      %72 = dma.hbm_to_vmem [thread:$0]  %s5, 256, %s67, [#allocation6], 128, 128, 8
    $region25: #{tpu_custom_call.1} parent=1 // pred_fallthru
      _
    // Predicated region
    $region26: #{tpu_custom_call.1} parent=1 // pred_check
      _
    $region27: #{tpu_custom_call.1} parent=1 // pred_check_branch
      %74 = sbr.rel (0) target = $region29
    $region28: #{tpu_custom_call.1} parent=1 // pred_region
      _
    $region29: #{tpu_custom_call.1} parent=1 // pred_fallthru
      _
    // Predicated region
    $region30: #{tpu_custom_call.1} parent=1 // pred_check
      _
    $region31: #{tpu_custom_call.1} parent=1 // pred_check_branch
      %76 = sbr.rel (0) target = $region33
    $region32: #{tpu_custom_call.1} parent=1 // pred_region
      %s78 = ssub.s32 2048, 2048
      %79 = vsyncadd [#allocation9], %s78
      %s80 = sshll.u32 [#allocation8], 4
      %s81 = int_to_ptr.vmem [resolvable:$true] %s80
      %86 = dma.hbm_to_vmem [thread:$0]  %s7, 2048, %s81, [#allocation9], 128, 128, 8
    $region33: #{tpu_custom_call.1} parent=1 // pred_fallthru
      _
    // Predicated region
    $region34: #{tpu_custom_call.1} parent=1 // pred_check
      _
    $region35: #{tpu_custom_call.1} parent=1 // pred_check_branch
      %88 = sbr.rel (0) target = $region37
    $region36: #{tpu_custom_call.1} parent=1 // pred_region
      %s90 = ssub.s32 256, 256
      %91 = vsyncadd [#allocation9], %s90
      %s92 = sshll.u32 [#allocation10], 4
      %s93 = int_to_ptr.vmem [resolvable:$true] %s92
      %98 = dma.hbm_to_vmem [thread:$0]  %s8, 256, %s93, [#allocation9], 128, 128, 8
    $region37: #{tpu_custom_call.1} parent=1 // pred_fallthru
      _
    // Predicated region
    $region38: #{tpu_custom_call.1} parent=1 // pred_check
      _
    $region39: #{tpu_custom_call.1} parent=1 // pred_check_branch
      %100 = sbr.rel (0) target = $region41
    $region40: #{tpu_custom_call.1} parent=1 // pred_region
      _
    $region41: #{tpu_custom_call.1} parent=1 // pred_fallthru
      _
    // Predicated region
    $region42: #{tpu_custom_call.1} parent=1 // pred_check
      _
    $region43: #{tpu_custom_call.1} parent=1 // pred_check_branch
      %102 = sbr.rel (0) target = $region45
    $region44: #{tpu_custom_call.1} parent=1 // pred_region
      %s104 = ssub.s32 2048, 2048
      %105 = vsyncadd [#allocation12], %s104
      %s106 = sshll.u32 [#allocation11], 4
      %s107 = int_to_ptr.vmem [resolvable:$true] %s106
      %112 = dma.hbm_to_vmem [thread:$0]  %s10, 2048, %s107, [#allocation12], 128, 128, 8
    $region45: #{tpu_custom_call.1} parent=1 // pred_fallthru
      _
    // Predicated region
    $region46: #{tpu_custom_call.1} parent=1 // pred_check
      _
    $region47: #{tpu_custom_call.1} parent=1 // pred_check_branch
      %114 = sbr.rel (0) target = $region49
    $region48: #{tpu_custom_call.1} parent=1 // pred_region
      %s116 = ssub.s32 2048, 2048
      %117 = vsyncadd [#allocation12], %s116
      %s118 = sshll.u32 [#allocation13], 4
      %s119 = int_to_ptr.vmem [resolvable:$true] %s118
      %124 = dma.hbm_to_vmem [thread:$0]  %s11, 2048, %s119, [#allocation12], 128, 128, 8
    $region49: #{tpu_custom_call.1} parent=1 // pred_fallthru
      _
    // Predicated region
    $region50: #{tpu_custom_call.1} parent=1 // pred_check
      _
    $region51: #{tpu_custom_call.1} parent=1 // pred_check_branch
      %126 = sbr.rel (0) target = $region53
    $region52: #{tpu_custom_call.1} parent=1 // pred_region
      _
    $region53: #{tpu_custom_call.1} parent=1 // pred_fallthru
      _
    // Predicated region
    $region54: #{tpu_custom_call.1} parent=1 // pred_check
      _
    $region55: #{tpu_custom_call.1} parent=1 // pred_check_branch
      %128 = sbr.rel (0) target = $region57
    $region56: #{tpu_custom_call.1} parent=1 // pred_region
      %s130 = ssub.s32 2048, 2048
      %131 = vsyncadd [#allocation15], %s130
      %s132 = sshll.u32 [#allocation14], 4
      %s133 = int_to_ptr.vmem [resolvable:$true] %s132
      %138 = dma.hbm_to_vmem [thread:$0]  %s13, 2048, %s133, [#allocation15], 128, 128, 8
    $region57: #{tpu_custom_call.1} parent=1 // pred_fallthru
      _
    // Predicated region
    $region58: #{tpu_custom_call.1} parent=1 // pred_check
      _
    $region59: #{tpu_custom_call.1} parent=1 // pred_check_branch
      %140 = sbr.rel (0) target = $region61
    $region60: #{tpu_custom_call.1} parent=1 // pred_region
      %s142 = ssub.s32 2048, 2048
      %143 = vsyncadd [#allocation15], %s142
      %s144 = sshll.u32 [#allocation16], 4
      %s145 = int_to_ptr.vmem [resolvable:$true] %s144
      %150 = dma.hbm_to_vmem [thread:$0]  %s14, 2048, %s145, [#allocation15], 128, 128, 8
    $region61: #{tpu_custom_call.1} parent=1 // pred_fallthru
      _
    // Predicated region
    $region62: #{tpu_custom_call.1} parent=1 // pred_check
      _
    $region63: #{tpu_custom_call.1} parent=1 // pred_check_branch
      %152 = sbr.rel (0) target = $region65
    $region64: #{tpu_custom_call.1} parent=1 // pred_region
      %s154 = ssub.s32 2048, 2048
      %155 = vsyncadd [#allocation18], %s154
      %s156 = sshll.u32 [#allocation17], 4
      %s157 = int_to_ptr.vmem [resolvable:$true] %s156
      %162 = dma.hbm_to_vmem [thread:$0]  %s15, 2048, %s157, [#allocation18], 128, 128, 8
    $region65: #{tpu_custom_call.1} parent=1 // pred_fallthru
      _
    // Predicated region
    $region66: #{tpu_custom_call.1} parent=1 // pred_check
      _
    $region67: #{tpu_custom_call.1} parent=1 // pred_check_branch
      %164 = sbr.rel (0) target = $region69
    $region68: #{tpu_custom_call.1} parent=1 // pred_region
      _
    $region69: #{tpu_custom_call.1} parent=1 // pred_fallthru
      _
    // Predicated region
    $region70: #{tpu_custom_call.1} parent=1 // pred_check
      _
    $region71: #{tpu_custom_call.1} parent=1 // pred_check_branch
      %166 = sbr.rel (0) target = $region73
    $region72: #{tpu_custom_call.1} parent=1 // pred_region
      %s168 = ssub.s32 2048, 2048
      %169 = vsyncadd [#allocation18], %s168
      %s170 = sshll.u32 [#allocation19], 4
      %s171 = int_to_ptr.vmem [resolvable:$true] %s170
      %176 = dma.hbm_to_vmem [thread:$0]  %s17, 2048, %s171, [#allocation18], 128, 128, 8
    $region73: #{tpu_custom_call.1} parent=1 // pred_fallthru
      _
    // Predicated region
    $region74: #{tpu_custom_call.1} parent=1 // pred_check
      _
    $region75: #{tpu_custom_call.1} parent=1 // pred_check_branch
      %178 = sbr.rel (0) target = $region77
    $region76: #{tpu_custom_call.1} parent=1 // pred_region
      _
    $region77: #{tpu_custom_call.1} parent=1 // pred_fallthru
      _
    // Predicated region
    $region78: #{tpu_custom_call.1} parent=1 // pred_check
      _
    $region79: #{tpu_custom_call.1} parent=1 // pred_check_branch
      %180 = sbr.rel (0) target = $region81
    $region80: #{tpu_custom_call.1} parent=1 // pred_region
      %181 = dma.done [#allocation3], 16
    $region81: #{tpu_custom_call.1} parent=1 // pred_fallthru
      _
    // Predicated region
    $region82: #{tpu_custom_call.1} parent=1 // pred_check
      _
    $region83: #{tpu_custom_call.1} parent=1 // pred_check_branch
      %183 = sbr.rel (0) target = $region85
    $region84: #{tpu_custom_call.1} parent=1 // pred_region
      %184 = dma.done [#allocation6], 128
    $region85: #{tpu_custom_call.1} parent=1 // pred_fallthru
      _
    // Predicated region
    $region86: #{tpu_custom_call.1} parent=1 // pred_check
      _
    $region87: #{tpu_custom_call.1} parent=1 // pred_check_branch
      %186 = sbr.rel (0) target = $region89
    $region88: #{tpu_custom_call.1} parent=1 // pred_region
      %187 = dma.done [#allocation6], 256
    $region89: #{tpu_custom_call.1} parent=1 // pred_fallthru
      _
    // Predicated region
    $region90: #{tpu_custom_call.1} parent=1 // pred_check
      _
    $region91: #{tpu_custom_call.1} parent=1 // pred_check_branch
      %189 = sbr.rel (0) target = $region93
    $region92: #{tpu_custom_call.1} parent=1 // pred_region
      %190 = dma.done [#allocation9], 2048
    $region93: #{tpu_custom_call.1} parent=1 // pred_fallthru
      _
    // Predicated region
    $region94: #{tpu_custom_call.1} parent=1 // pred_check
      _
    $region95: #{tpu_custom_call.1} parent=1 // pred_check_branch
      %192 = sbr.rel (0) target = $region97
    $region96: #{tpu_custom_call.1} parent=1 // pred_region
      %193 = dma.done [#allocation9], 256
    $region97: #{tpu_custom_call.1} parent=1 // pred_fallthru
      _
    // Predicated region
    $region98: #{tpu_custom_call.1} parent=1 // pred_check
      _
    $region99: #{tpu_custom_call.1} parent=1 // pred_check_branch
      %195 = sbr.rel (0) target = $region101
    $region100: #{tpu_custom_call.1} parent=1 // pred_region
      %196 = dma.done [#allocation12], 2048
    $region101: #{tpu_custom_call.1} parent=1 // pred_fallthru
      _
    // Predicated region
    $region102: #{tpu_custom_call.1} parent=1 // pred_check
      _
    $region103: #{tpu_custom_call.1} parent=1 // pred_check_branch
      %198 = sbr.rel (0) target = $region105
    $region104: #{tpu_custom_call.1} parent=1 // pred_region
      %199 = dma.done [#allocation12], 2048
    $region105: #{tpu_custom_call.1} parent=1 // pred_fallthru
      _
    // Predicated region
    $region106: #{tpu_custom_call.1} parent=1 // pred_check
      _
    $region107: #{tpu_custom_call.1} parent=1 // pred_check_branch
      %201 = sbr.rel (0) target = $region109
    $region108: #{tpu_custom_call.1} parent=1 // pred_region
      %202 = dma.done [#allocation15], 2048
    $region109: #{tpu_custom_call.1} parent=1 // pred_fallthru
      _
    // Predicated region
    $region110: #{tpu_custom_call.1} parent=1 // pred_check
      _
    $region111: #{tpu_custom_call.1} parent=1 // pred_check_branch
      %204 = sbr.rel (0) target = $region113
    $region112: #{tpu_custom_call.1} parent=1 // pred_region
      %205 = dma.done [#allocation15], 2048
    $region113: #{tpu_custom_call.1} parent=1 // pred_fallthru
      _
    // Predicated region
    $region114: #{tpu_custom_call.1} parent=1 // pred_check
      _
    $region115: #{tpu_custom_call.1} parent=1 // pred_check_branch
      %207 = sbr.rel (0) target = $region117
    $region116: #{tpu_custom_call.1} parent=1 // pred_region
      %208 = dma.done [#allocation18], 2048
    $region117: #{tpu_custom_call.1} parent=1 // pred_fallthru
      _
    // Predicated region
    $region118: #{tpu_custom_call.1} parent=1 // pred_check
      _
    $region119: #{tpu_custom_call.1} parent=1 // pred_check_branch
      %210 = sbr.rel (0) target = $region121
    $region120: #{tpu_custom_call.1} parent=1 // pred_region
      %211 = dma.done [#allocation18], 2048
    $region121: #{tpu_custom_call.1} parent=1 // pred_fallthru
      _
    %v213 = vld [vmem:[%s2] sm:$0xff]
    %v214 = vld [vmem:[%s2 + $0x8] sm:$0xff]
    %v215 = vld [vmem:[#allocation5] sm:$0xff]
    %v216 = vlaneseq
    %v217 = vand.u32 %v216, 127
    %v218 = vld [vmem:[%s0] sm:$0xff]
    %v219 = vld [vmem:[%s0 + $0x8] sm:$0xff]
    %220 = vset.pattern.permute.xlu0 0
    %221 = vperm.xlu0 %220, %v218
    %v222 = vpop.permute.xlu0 %221
    %223 = vset.pattern.permute.xlu0 0
    %224 = vperm.xlu0 %223, %v219
    %v225 = vpop.permute.xlu0 %224
    %vm226 = vcmp.eq.s32.totalorder %v217, %v222
    %vm227 = vcmp.eq.s32.totalorder %v217, %v225
    %v228 = vsel %vm226, 1.0, 0.0
    %v229 = vsel %vm227, 1.0, 0.0
    %v230 = vpack.c.bf16 %v229, %v228
    %v231 = vlaneseq
    %v232 = vshrl.u32 %v231, 7
    %v233 = vld [vmem:[#allocation2] sm:$0x1]
    %v234 = vlaneseq
    %v235 = vshrl.u32 %v234, 7
    %v236 = vsub.s32 0, %v235
    %v237 = vrot.slane %v233, %v236
    %vm238 = vcmp.eq.s32.totalorder %v232, %v237
    %v239 = vsel %vm238, 1.0, 0.0
    %v240 = vpack.c.bf16 %v239, %v239
    %v241 = vpack.c.bf16 %v215, %v215
    %vm242 = vcmask 64512
    %v244 = vsel %vm242, %v230, 0
    %vm246 = vcmask 1043456
    %v248 = vsel %vm246, %v241, 0
    %250 = vmatprep.subr.bf16.mxu0 0
    %251 = vmatpush1.bf16.msra.mxu0 %v248
    %252 = vmatprep.subr.bf16.mxu0 0
    %253 = vmatpush1.bf16.msra.mxu0 0
    %254 = vmatprep.subr.bf16.mxu0 0
    %255 = vmatpush1.bf16.msra.mxu0 0
    %256 = vmatprep.subr.bf16.mxu0 0
    %257 = vmatpush1.bf16.msra.mxu0 0
    %258 = vmatprep.subr.bf16.mxu0 0
    %259 = vmatpush1.bf16.msra.mxu0 0
    %260 = vmatprep.subr.bf16.mxu0 0
    %261 = vmatpush1.bf16.msra.mxu0 0
    %262 = vmatprep.subr.bf16.mxu0 0
    %263 = vmatpush1.bf16.msra.mxu0 0
    %264 = vmatprep.subr.bf16.mxu0 0
    %265 = vmatpush1.bf16.msra.mxu0 0
    %266 = vmatprep.subr.bf16.mxu0 0
    %267 = vmatpush1.bf16.msra.mxu0 0
    %268 = vmatprep.subr.bf16.mxu0 0
    %269 = vmatpush1.bf16.msra.mxu0 0
    %270 = vmatprep.subr.bf16.mxu0 0
    %271 = vmatpush1.bf16.msra.mxu0 0
    %272 = vmatprep.subr.bf16.mxu0 0
    %273 = vmatpush1.bf16.msra.mxu0 0
    %274 = vmatprep.subr.bf16.mxu0 0
    %275 = vmatpush1.bf16.msra.mxu0 0
    %276 = vmatprep.subr.bf16.mxu0 0
    %277 = vmatpush1.bf16.msra.mxu0 0
    %278 = vmatprep.subr.bf16.mxu0 0
    %279 = vmatpush1.bf16.msra.mxu0 0
    %280 = vmatprep.subr.bf16.mxu0 0
    %281 = vmatpush1.bf16.msra.mxu0 0
    %282 = vmatprep.mubr.bf16.mxu0 0
    %283 = vmatmul.mubr.bf16.gmra.mrb[0].mxu0 %v244
    %v284 = vpop.f32.mrb[0].mxu0
    %v285 = vadd.f32 0.0, %v284
    %v286 = vpop.f32.mrb[0].mxu0
    %v287 = vpop.f32.mrb[0].mxu0
    %v288 = vadd.f32 0.0, %v287
    %v289 = vpop.f32.mrb[0].mxu0
    %290 = vdwg.mxu0
    %v291 = vld [vmem:[%s4] sm:$0xff]
    %v292 = vld [vmem:[%s4 + $0x8] sm:$0x1]
    %v293 = vld [vmem:[#allocation7] sm:$0xff]
    %v294 = vld [vmem:[#allocation7 + $0x8] sm:$0x7]
    %vm295 = vcmask 89088
    %v297 = vsel %vm295, %v285, 0
    %v300 = vsel %vm295, %v288, 0
    %vm302 = vcmask 1042432
    %v304 = vsel %vm302, %v294, 0
    %306 = vmatprep.subr.mxu0 0.0
    %307 = vmatpush1.msra.mxu0 %v293
    %308 = vmatprep.subr.mxu0 0.0
    %309 = vmatpush1.msra.mxu0 %v304
    %310 = vmatprep.subr.mxu0 0.0
    %311 = vmatpush1.msra.mxu0 0.0
    %312 = vmatprep.subr.mxu0 0.0
    %313 = vmatpush1.msra.mxu0 0.0
    %314 = vmatprep.subr.mxu0 0.0
    %315 = vmatpush1.msra.mxu0 0.0
    %316 = vmatprep.subr.mxu0 0.0
    %317 = vmatpush1.msra.mxu0 0.0
    %318 = vmatprep.subr.mxu0 0.0
    %319 = vmatpush1.msra.mxu0 0.0
    %320 = vmatprep.subr.mxu0 0.0
    %321 = vmatpush1.msra.mxu0 0.0
    %322 = vmatprep.subr.mxu0 0.0
    %323 = vmatpush1.msra.mxu0 0.0
    %324 = vmatprep.subr.mxu0 0.0
    %325 = vmatpush1.msra.mxu0 0.0
    %326 = vmatprep.subr.mxu0 0.0
    %327 = vmatpush1.msra.mxu0 0.0
    %328 = vmatprep.subr.mxu0 0.0
    %329 = vmatpush1.msra.mxu0 0.0
    %330 = vmatprep.subr.mxu0 0.0
    %331 = vmatpush1.msra.mxu0 0.0
    %332 = vmatprep.subr.mxu0 0.0
    %333 = vmatpush1.msra.mxu0 0.0
    %334 = vmatprep.subr.mxu0 0.0
    %335 = vmatpush1.msra.mxu0 0.0
    %336 = vmatprep.subr.mxu0 0.0
    %337 = vmatpush1.msra.mxu0 0.0
    %338 = vmatprep.subr.mxu0 0.0
    %339 = vmatpush1.msra.mxu0 0.0
    %340 = vmatprep.subr.mxu0 0.0
    %341 = vmatpush1.msra.mxu0 0.0
    %342 = vmatprep.subr.mxu0 0.0
    %343 = vmatpush1.msra.mxu0 0.0
    %344 = vmatprep.subr.mxu0 0.0
    %345 = vmatpush1.msra.mxu0 0.0
    %346 = vmatprep.subr.mxu0 0.0
    %347 = vmatpush1.msra.mxu0 0.0
    %348 = vmatprep.subr.mxu0 0.0
    %349 = vmatpush1.msra.mxu0 0.0
    %350 = vmatprep.subr.mxu0 0.0
    %351 = vmatpush1.msra.mxu0 0.0
    %352 = vmatprep.subr.mxu0 0.0
    %353 = vmatpush1.msra.mxu0 0.0
    %354 = vmatprep.subr.mxu0 0.0
    %355 = vmatpush1.msra.mxu0 0.0
    %356 = vmatprep.subr.mxu0 0.0
    %357 = vmatpush1.msra.mxu0 0.0
    %358 = vmatprep.subr.mxu0 0.0
    %359 = vmatpush1.msra.mxu0 0.0
    %360 = vmatprep.subr.mxu0 0.0
    %361 = vmatpush1.msra.mxu0 0.0
    %362 = vmatprep.subr.mxu0 0.0
    %363 = vmatpush1.msra.mxu0 0.0
    %364 = vmatprep.subr.mxu0 0.0
    %365 = vmatpush1.msra.mxu0 0.0
    %366 = vmatprep.subr.mxu0 0.0
    %367 = vmatpush1.msra.mxu0 0.0
    %368 = vmatprep.subr.mxu0 0.0
    %369 = vmatpush1.msra.mxu0 0.0
    %370 = vmatprep.mubr.f32.mxu0 0.0
    %371 = vmatmul.mubr.f32.gmra.mrb[0].mxu0 %v297
    %v372 = vpop.f32.mrb[0].mxu0
    %v373 = vadd.f32 0.0, %v372
    %v374 = vpop.f32.mrb[0].mxu0
    %375 = vmatprep.mubr.f32.mxu0 0.0
    %376 = vmatmul.mubr.f32.gmra.mrb[0].mxu0 %v300
    %v377 = vpop.f32.mrb[0].mxu0
    %v378 = vadd.f32 0.0, %v377
    %v379 = vpop.f32.mrb[0].mxu0
    %380 = vdwg.mxu0
    %vm381 = vcmask 72704
    %v383 = vsel %vm381, %v213, 0
    %v386 = vsel %vm381, %v214, 0
    %vm388 = vcmask 1040384
    %v390 = vsel %vm388, %v292, 0
    %392 = vmatprep.subr.mxu0 0.0
    %393 = vmatpush1.msra.mxu0 %v291
    %394 = vmatprep.subr.mxu0 0.0
    %395 = vmatpush1.msra.mxu0 %v390
    %396 = vmatprep.subr.mxu0 0.0
    %397 = vmatpush1.msra.mxu0 0.0
    %398 = vmatprep.subr.mxu0 0.0
    %399 = vmatpush1.msra.mxu0 0.0
    %400 = vmatprep.subr.mxu0 0.0
    %401 = vmatpush1.msra.mxu0 0.0
    %402 = vmatprep.subr.mxu0 0.0
    %403 = vmatpush1.msra.mxu0 0.0
    %404 = vmatprep.subr.mxu0 0.0
    %405 = vmatpush1.msra.mxu0 0.0
    %406 = vmatprep.subr.mxu0 0.0
    %407 = vmatpush1.msra.mxu0 0.0
    %408 = vmatprep.subr.mxu0 0.0
    %409 = vmatpush1.msra.mxu0 0.0
    %410 = vmatprep.subr.mxu0 0.0
    %411 = vmatpush1.msra.mxu0 0.0
    %412 = vmatprep.subr.mxu0 0.0
    %413 = vmatpush1.msra.mxu0 0.0
    %414 = vmatprep.subr.mxu0 0.0
    %415 = vmatpush1.msra.mxu0 0.0
    %416 = vmatprep.subr.mxu0 0.0
    %417 = vmatpush1.msra.mxu0 0.0
    %418 = vmatprep.subr.mxu0 0.0
    %419 = vmatpush1.msra.mxu0 0.0
    %420 = vmatprep.subr.mxu0 0.0
    %421 = vmatpush1.msra.mxu0 0.0
    %422 = vmatprep.subr.mxu0 0.0
    %423 = vmatpush1.msra.mxu0 0.0
    %424 = vmatprep.subr.mxu0 0.0
    %425 = vmatpush1.msra.mxu0 0.0
    %426 = vmatprep.subr.mxu0 0.0
    %427 = vmatpush1.msra.mxu0 0.0
    %428 = vmatprep.subr.mxu0 0.0
    %429 = vmatpush1.msra.mxu0 0.0
    %430 = vmatprep.subr.mxu0 0.0
    %431 = vmatpush1.msra.mxu0 0.0
    %432 = vmatprep.subr.mxu0 0.0
    %433 = vmatpush1.msra.mxu0 0.0
    %434 = vmatprep.subr.mxu0 0.0
    %435 = vmatpush1.msra.mxu0 0.0
    %436 = vmatprep.subr.mxu0 0.0
    %437 = vmatpush1.msra.mxu0 0.0
    %438 = vmatprep.subr.mxu0 0.0
    %439 = vmatpush1.msra.mxu0 0.0
    %440 = vmatprep.subr.mxu0 0.0
    %441 = vmatpush1.msra.mxu0 0.0
    %442 = vmatprep.subr.mxu0 0.0
    %443 = vmatpush1.msra.mxu0 0.0
    %444 = vmatprep.subr.mxu0 0.0
    %445 = vmatpush1.msra.mxu0 0.0
    %446 = vmatprep.subr.mxu0 0.0
    %447 = vmatpush1.msra.mxu0 0.0
    %448 = vmatprep.subr.mxu0 0.0
    %449 = vmatpush1.msra.mxu0 0.0
    %450 = vmatprep.subr.mxu0 0.0
    %451 = vmatpush1.msra.mxu0 0.0
    %452 = vmatprep.subr.mxu0 0.0
    %453 = vmatpush1.msra.mxu0 0.0
    %454 = vmatprep.subr.mxu0 0.0
    %455 = vmatpush1.msra.mxu0 0.0
    %456 = vmatprep.mubr.f32.mxu0 0.0
    %457 = vmatmul.mubr.f32.gmra.mrb[0].mxu0 %v383
    %v458 = vpop.f32.mrb[0].mxu0
    %v459 = vadd.f32 %v373, %v458
    %v460 = vpop.f32.mrb[0].mxu0
    %461 = vmatprep.mubr.f32.mxu0 0.0
    %462 = vmatmul.mubr.f32.gmra.mrb[0].mxu0 %v386
    %v463 = vpop.f32.mrb[0].mxu0
    %v464 = vadd.f32 %v378, %v463
    %v465 = vpop.f32.mrb[0].mxu0
    %466 = vdwg.mxu0
    %v467 = vld [vmem:[%s6] sm:$0x1]
    %v469 = vlaneseq
    %v470 = vshrl.u32 %v469, 7
    %v471 = vsub.s32 0, %v470
    %v472 = vrot.slane %v467, %v471
    %v474 = vadd.f32 %v459, %v472
    %v475 = vadd.f32 %v464, %v472
    %v476 = vmax.f32 %v474, 0.0
    %v477 = vmax.f32 %v475, 0.0
    %v478 = vpack.c.bf16 %v477, %v476
    %vm479 = vcmask 130048
    %v481 = vsel %vm479, %v240, 0
    %483 = vmatprep.subr.bf16.mxu0 0
    %484 = vmatpush1.bf16.msra.mxu0 %v478
    %485 = vmatprep.subr.bf16.mxu0 0
    %486 = vmatpush1.bf16.msra.mxu0 0
    %487 = vmatprep.subr.bf16.mxu0 0
    %488 = vmatpush1.bf16.msra.mxu0 0
    %489 = vmatprep.subr.bf16.mxu0 0
    %490 = vmatpush1.bf16.msra.mxu0 0
    %491 = vmatprep.subr.bf16.mxu0 0
    %492 = vmatpush1.bf16.msra.mxu0 0
    %493 = vmatprep.subr.bf16.mxu0 0
    %494 = vmatpush1.bf16.msra.mxu0 0
    %495 = vmatprep.subr.bf16.mxu0 0
    %496 = vmatpush1.bf16.msra.mxu0 0
    %497 = vmatprep.subr.bf16.mxu0 0
    %498 = vmatpush1.bf16.msra.mxu0 0
    %499 = vmatprep.subr.bf16.mxu0 0
    %500 = vmatpush1.bf16.msra.mxu0 0
    %501 = vmatprep.subr.bf16.mxu0 0
    %502 = vmatpush1.bf16.msra.mxu0 0
    %503 = vmatprep.subr.bf16.mxu0 0
    %504 = vmatpush1.bf16.msra.mxu0 0
    %505 = vmatprep.subr.bf16.mxu0 0
    %506 = vmatpush1.bf16.msra.mxu0 0
    %507 = vmatprep.subr.bf16.mxu0 0
    %508 = vmatpush1.bf16.msra.mxu0 0
    %509 = vmatprep.subr.bf16.mxu0 0
    %510 = vmatpush1.bf16.msra.mxu0 0
    %511 = vmatprep.subr.bf16.mxu0 0
    %512 = vmatpush1.bf16.msra.mxu0 0
    %513 = vmatprep.subr.bf16.mxu0 0
    %514 = vmatpush1.bf16.msra.mxu0 0
    %515 = vmatprep.mubr.bf16.mxu0 0
    %516 = vmatmul.mubr.bf16.gmra.mrb[0].mxu0 %v481
    %v517 = vpop.f32.mrb[0].mxu0
    %v518 = vadd.f32 0.0, %v517
    %v519 = vpop.f32.mrb[0].mxu0
    %v520 = vpop.f32.mrb[0].mxu0
    %v521 = vpop.f32.mrb[0].mxu0
    %522 = vdwg.mxu0
    %v523 = vld [vmem:[#allocation8] sm:$0xff]
    %v524 = vld [vmem:[#allocation8 + $0x8] sm:$0xff]
    %v525 = vld [vmem:[#allocation8 + $0x10] sm:$0xff]
    %v526 = vld [vmem:[#allocation8 + $0x18] sm:$0xff]
    %v527 = vld [vmem:[#allocation8 + $0x20] sm:$0xff]
    %v528 = vld [vmem:[#allocation8 + $0x28] sm:$0xff]
    %v529 = vld [vmem:[#allocation8 + $0x30] sm:$0xff]
    %v530 = vld [vmem:[#allocation8 + $0x38] sm:$0xff]
    %v531 = vld [vmem:[#allocation8 + $0x40] sm:$0xff]
    %v532 = vld [vmem:[#allocation8 + $0x48] sm:$0xff]
    %v533 = vld [vmem:[#allocation8 + $0x50] sm:$0xff]
    %v534 = vld [vmem:[#allocation8 + $0x58] sm:$0xff]
    %v535 = vld [vmem:[#allocation8 + $0x60] sm:$0xff]
    %v536 = vld [vmem:[#allocation8 + $0x68] sm:$0xff]
    %v537 = vld [vmem:[#allocation8 + $0x70] sm:$0xff]
    %v538 = vld [vmem:[#allocation8 + $0x78] sm:$0xff]
    %v539 = vld [vmem:[#allocation10] sm:$0xff]
    %v540 = vld [vmem:[#allocation10 + $0x8] sm:$0x7]
    %v542 = vsel %vm295, %v215, 0
    %v545 = vsel %vm302, %v540, 0
    %547 = vmatprep.subr.mxu0 0.0
    %548 = vmatpush1.msra.mxu0 %v539
    %549 = vmatprep.subr.mxu0 0.0
    %550 = vmatpush1.msra.mxu0 %v545
    %551 = vmatprep.subr.mxu0 0.0
    %552 = vmatpush1.msra.mxu0 0.0
    %553 = vmatprep.subr.mxu0 0.0
    %554 = vmatpush1.msra.mxu0 0.0
    %555 = vmatprep.subr.mxu0 0.0
    %556 = vmatpush1.msra.mxu0 0.0
    %557 = vmatprep.subr.mxu0 0.0
    %558 = vmatpush1.msra.mxu0 0.0
    %559 = vmatprep.subr.mxu0 0.0
    %560 = vmatpush1.msra.mxu0 0.0
    %561 = vmatprep.subr.mxu0 0.0
    %562 = vmatpush1.msra.mxu0 0.0
    %563 = vmatprep.subr.mxu0 0.0
    %564 = vmatpush1.msra.mxu0 0.0
    %565 = vmatprep.subr.mxu0 0.0
    %566 = vmatpush1.msra.mxu0 0.0
    %567 = vmatprep.subr.mxu0 0.0
    %568 = vmatpush1.msra.mxu0 0.0
    %569 = vmatprep.subr.mxu0 0.0
    %570 = vmatpush1.msra.mxu0 0.0
    %571 = vmatprep.subr.mxu0 0.0
    %572 = vmatpush1.msra.mxu0 0.0
    %573 = vmatprep.subr.mxu0 0.0
    %574 = vmatpush1.msra.mxu0 0.0
    %575 = vmatprep.subr.mxu0 0.0
    %576 = vmatpush1.msra.mxu0 0.0
    %577 = vmatprep.subr.mxu0 0.0
    %578 = vmatpush1.msra.mxu0 0.0
    %579 = vmatprep.subr.mxu0 0.0
    %580 = vmatpush1.msra.mxu0 0.0
    %581 = vmatprep.subr.mxu0 0.0
    %582 = vmatpush1.msra.mxu0 0.0
    %583 = vmatprep.subr.mxu0 0.0
    %584 = vmatpush1.msra.mxu0 0.0
    %585 = vmatprep.subr.mxu0 0.0
    %586 = vmatpush1.msra.mxu0 0.0
    %587 = vmatprep.subr.mxu0 0.0
    %588 = vmatpush1.msra.mxu0 0.0
    %589 = vmatprep.subr.mxu0 0.0
    %590 = vmatpush1.msra.mxu0 0.0
    %591 = vmatprep.subr.mxu0 0.0
    %592 = vmatpush1.msra.mxu0 0.0
    %593 = vmatprep.subr.mxu0 0.0
    %594 = vmatpush1.msra.mxu0 0.0
    %595 = vmatprep.subr.mxu0 0.0
    %596 = vmatpush1.msra.mxu0 0.0
    %597 = vmatprep.subr.mxu0 0.0
    %598 = vmatpush1.msra.mxu0 0.0
    %599 = vmatprep.subr.mxu0 0.0
    %600 = vmatpush1.msra.mxu0 0.0
    %601 = vmatprep.subr.mxu0 0.0
    %602 = vmatpush1.msra.mxu0 0.0
    %603 = vmatprep.subr.mxu0 0.0
    %604 = vmatpush1.msra.mxu0 0.0
    %605 = vmatprep.subr.mxu0 0.0
    %606 = vmatpush1.msra.mxu0 0.0
    %607 = vmatprep.subr.mxu0 0.0
    %608 = vmatpush1.msra.mxu0 0.0
    %609 = vmatprep.subr.mxu0 0.0
    %610 = vmatpush1.msra.mxu0 0.0
    %611 = vmatprep.mubr.f32.mxu0 0.0
    %612 = vmatmul.mubr.f32.gmra.mrb[0].mxu0 %v542
    %v613 = vpop.f32.mrb[0].mxu0
    %v614 = vadd.f32 0.0, %v613
    %v615 = vpop.f32.mrb[0].mxu0
    %616 = vdwg.mxu0
    %617 = vmatprep.subr.mxu0 0.0
    %618 = vmatpush1.msra.mxu0 %v523
    %619 = vmatprep.subr.mxu0 0.0
    %620 = vmatpush1.msra.mxu0 %v524
    %621 = vmatprep.subr.mxu0 0.0
    %622 = vmatpush1.msra.mxu0 %v525
    %623 = vmatprep.subr.mxu0 0.0
    %624 = vmatpush1.msra.mxu0 %v526
    %625 = vmatprep.subr.mxu0 0.0
    %626 = vmatpush1.msra.mxu0 %v527
    %627 = vmatprep.subr.mxu0 0.0
    %628 = vmatpush1.msra.mxu0 %v528
    %629 = vmatprep.subr.mxu0 0.0
    %630 = vmatpush1.msra.mxu0 %v529
    %631 = vmatprep.subr.mxu0 0.0
    %632 = vmatpush1.msra.mxu0 %v530
    %633 = vmatprep.subr.mxu0 0.0
    %634 = vmatpush1.msra.mxu0 %v531
    %635 = vmatprep.subr.mxu0 0.0
    %636 = vmatpush1.msra.mxu0 %v532
    %637 = vmatprep.subr.mxu0 0.0
    %638 = vmatpush1.msra.mxu0 %v533
    %639 = vmatprep.subr.mxu0 0.0
    %640 = vmatpush1.msra.mxu0 %v534
    %641 = vmatprep.subr.mxu0 0.0
    %642 = vmatpush1.msra.mxu0 %v535
    %643 = vmatprep.subr.mxu0 0.0
    %644 = vmatpush1.msra.mxu0 %v536
    %645 = vmatprep.subr.mxu0 0.0
    %646 = vmatpush1.msra.mxu0 %v537
    %647 = vmatprep.subr.mxu0 0.0
    %648 = vmatpush1.msra.mxu0 %v538
    %649 = vmatprep.subr.mxu0 0.0
    %650 = vmatpush1.msra.mxu0 0.0
    %651 = vmatprep.subr.mxu0 0.0
    %652 = vmatpush1.msra.mxu0 0.0
    %653 = vmatprep.subr.mxu0 0.0
    %654 = vmatpush1.msra.mxu0 0.0
    %655 = vmatprep.subr.mxu0 0.0
    %656 = vmatpush1.msra.mxu0 0.0
    %657 = vmatprep.subr.mxu0 0.0
    %658 = vmatpush1.msra.mxu0 0.0
    %659 = vmatprep.subr.mxu0 0.0
    %660 = vmatpush1.msra.mxu0 0.0
    %661 = vmatprep.subr.mxu0 0.0
    %662 = vmatpush1.msra.mxu0 0.0
    %663 = vmatprep.subr.mxu0 0.0
    %664 = vmatpush1.msra.mxu0 0.0
    %665 = vmatprep.subr.mxu0 0.0
    %666 = vmatpush1.msra.mxu0 0.0
    %667 = vmatprep.subr.mxu0 0.0
    %668 = vmatpush1.msra.mxu0 0.0
    %669 = vmatprep.subr.mxu0 0.0
    %670 = vmatpush1.msra.mxu0 0.0
    %671 = vmatprep.subr.mxu0 0.0
    %672 = vmatpush1.msra.mxu0 0.0
    %673 = vmatprep.subr.mxu0 0.0
    %674 = vmatpush1.msra.mxu0 0.0
    %675 = vmatprep.subr.mxu0 0.0
    %676 = vmatpush1.msra.mxu0 0.0
    %677 = vmatprep.subr.mxu0 0.0
    %678 = vmatpush1.msra.mxu0 0.0
    %679 = vmatprep.subr.mxu0 0.0
    %680 = vmatpush1.msra.mxu0 0.0
    %681 = vmatprep.mubr.f32.mxu0 0.0
    %682 = vmatmul.mubr.f32.gmra.mrb[0].mxu0 %v518
    %v683 = vpop.f32.mrb[0].mxu0
    %v684 = vadd.f32 %v614, %v683
    %v685 = vpop.f32.mrb[0].mxu0
    %686 = vdwg.mxu0
    %v687 = vld [vmem:[%s9] sm:$0x1]
    %v689 = vlaneseq
    %v690 = vshrl.u32 %v689, 7
    %v691 = vsub.s32 0, %v690
    %v692 = vrot.slane %v687, %v691
    %v694 = vadd.f32 %v684, %v692
    %v695 = vmax.f32 %v694, 0.0
    %v696 = vadd.f32 %v476, %v477
    %v697 = vrot.slane %v696, 4
    %v698 = vadd.f32 %v696, %v697
    %v699 = vrot.slane %v698, 2
    %v700 = vadd.f32 %v698, %v699
    %v701 = vrot.slane %v700, 1
    %v702 = vadd.f32 %v700, %v701
    %v703 = vrcp.pop 16.0
    %v704 = vmul.f32 %v702, %v703
    %v705 = vrot.slane %v695, 4
    %v706 = vadd.f32 %v695, %v705
    %v707 = vrot.slane %v706, 2
    %v708 = vadd.f32 %v706, %v707
    %v709 = vrot.slane %v708, 1
    %v710 = vadd.f32 %v708, %v709
    %v711 = vrcp.pop 8.0
    %v712 = vmul.f32 %v710, %v711
    %v713 = vld [vmem:[#allocation11] sm:$0xff]
    %v714 = vld [vmem:[#allocation11 + $0x8] sm:$0xff]
    %v715 = vld [vmem:[#allocation11 + $0x10] sm:$0xff]
    %v716 = vld [vmem:[#allocation11 + $0x18] sm:$0xff]
    %v717 = vld [vmem:[#allocation11 + $0x20] sm:$0xff]
    %v718 = vld [vmem:[#allocation11 + $0x28] sm:$0xff]
    %v719 = vld [vmem:[#allocation11 + $0x30] sm:$0xff]
    %v720 = vld [vmem:[#allocation11 + $0x38] sm:$0xff]
    %v721 = vld [vmem:[#allocation11 + $0x40] sm:$0xff]
    %v722 = vld [vmem:[#allocation11 + $0x48] sm:$0xff]
    %v723 = vld [vmem:[#allocation11 + $0x50] sm:$0xff]
    %v724 = vld [vmem:[#allocation11 + $0x58] sm:$0xff]
    %v725 = vld [vmem:[#allocation11 + $0x60] sm:$0xff]
    %v726 = vld [vmem:[#allocation11 + $0x68] sm:$0xff]
    %v727 = vld [vmem:[#allocation11 + $0x70] sm:$0xff]
    %v728 = vld [vmem:[#allocation11 + $0x78] sm:$0xff]
    %v729 = vld [vmem:[#allocation13] sm:$0xff]
    %v730 = vld [vmem:[#allocation13 + $0x8] sm:$0xff]
    %v731 = vld [vmem:[#allocation13 + $0x10] sm:$0xff]
    %v732 = vld [vmem:[#allocation13 + $0x18] sm:$0xff]
    %v733 = vld [vmem:[#allocation13 + $0x20] sm:$0xff]
    %v734 = vld [vmem:[#allocation13 + $0x28] sm:$0xff]
    %v735 = vld [vmem:[#allocation13 + $0x30] sm:$0xff]
    %v736 = vld [vmem:[#allocation13 + $0x38] sm:$0xff]
    %v737 = vld [vmem:[#allocation13 + $0x40] sm:$0xff]
    %v738 = vld [vmem:[#allocation13 + $0x48] sm:$0xff]
    %v739 = vld [vmem:[#allocation13 + $0x50] sm:$0xff]
    %v740 = vld [vmem:[#allocation13 + $0x58] sm:$0xff]
    %v741 = vld [vmem:[#allocation13 + $0x60] sm:$0xff]
    %v742 = vld [vmem:[#allocation13 + $0x68] sm:$0xff]
    %v743 = vld [vmem:[#allocation13 + $0x70] sm:$0xff]
    %v744 = vld [vmem:[#allocation13 + $0x78] sm:$0xff]
    %745 = vmatprep.subr.mxu0 0.0
    %746 = vmatpush1.msra.mxu0 %v729
    %747 = vmatprep.subr.mxu0 0.0
    %748 = vmatpush1.msra.mxu0 %v730
    %749 = vmatprep.subr.mxu0 0.0
    %750 = vmatpush1.msra.mxu0 %v731
    %751 = vmatprep.subr.mxu0 0.0
    %752 = vmatpush1.msra.mxu0 %v732
    %753 = vmatprep.subr.mxu0 0.0
    %754 = vmatpush1.msra.mxu0 %v733
    %755 = vmatprep.subr.mxu0 0.0
    %756 = vmatpush1.msra.mxu0 %v734
    %757 = vmatprep.subr.mxu0 0.0
    %758 = vmatpush1.msra.mxu0 %v735
    %759 = vmatprep.subr.mxu0 0.0
    %760 = vmatpush1.msra.mxu0 %v736
    %761 = vmatprep.subr.mxu0 0.0
    %762 = vmatpush1.msra.mxu0 %v737
    %763 = vmatprep.subr.mxu0 0.0
    %764 = vmatpush1.msra.mxu0 %v738
    %765 = vmatprep.subr.mxu0 0.0
    %766 = vmatpush1.msra.mxu0 %v739
    %767 = vmatprep.subr.mxu0 0.0
    %768 = vmatpush1.msra.mxu0 %v740
    %769 = vmatprep.subr.mxu0 0.0
    %770 = vmatpush1.msra.mxu0 %v741
    %771 = vmatprep.subr.mxu0 0.0
    %772 = vmatpush1.msra.mxu0 %v742
    %773 = vmatprep.subr.mxu0 0.0
    %774 = vmatpush1.msra.mxu0 %v743
    %775 = vmatprep.subr.mxu0 0.0
    %776 = vmatpush1.msra.mxu0 %v744
    %777 = vmatprep.subr.mxu0 0.0
    %778 = vmatpush1.msra.mxu0 0.0
    %779 = vmatprep.subr.mxu0 0.0
    %780 = vmatpush1.msra.mxu0 0.0
    %781 = vmatprep.subr.mxu0 0.0
    %782 = vmatpush1.msra.mxu0 0.0
    %783 = vmatprep.subr.mxu0 0.0
    %784 = vmatpush1.msra.mxu0 0.0
    %785 = vmatprep.subr.mxu0 0.0
    %786 = vmatpush1.msra.mxu0 0.0
    %787 = vmatprep.subr.mxu0 0.0
    %788 = vmatpush1.msra.mxu0 0.0
    %789 = vmatprep.subr.mxu0 0.0
    %790 = vmatpush1.msra.mxu0 0.0
    %791 = vmatprep.subr.mxu0 0.0
    %792 = vmatpush1.msra.mxu0 0.0
    %793 = vmatprep.subr.mxu0 0.0
    %794 = vmatpush1.msra.mxu0 0.0
    %795 = vmatprep.subr.mxu0 0.0
    %796 = vmatpush1.msra.mxu0 0.0
    %797 = vmatprep.subr.mxu0 0.0
    %798 = vmatpush1.msra.mxu0 0.0
    %799 = vmatprep.subr.mxu0 0.0
    %800 = vmatpush1.msra.mxu0 0.0
    %801 = vmatprep.subr.mxu0 0.0
    %802 = vmatpush1.msra.mxu0 0.0
    %803 = vmatprep.subr.mxu0 0.0
    %804 = vmatpush1.msra.mxu0 0.0
    %805 = vmatprep.subr.mxu0 0.0
    %806 = vmatpush1.msra.mxu0 0.0
    %807 = vmatprep.subr.mxu0 0.0
    %808 = vmatpush1.msra.mxu0 0.0
    %809 = vmatprep.mubr.f32.mxu0 0.0
    %810 = vmatmul.mubr.f32.gmra.mrb[0].mxu0 %v712
    %v811 = vpop.f32.mrb[0].mxu0
    %v812 = vadd.f32 0.0, %v811
    %v813 = vpop.f32.mrb[0].mxu0
    %814 = vdwg.mxu0
    %815 = vmatprep.subr.mxu0 0.0
    %816 = vmatpush1.msra.mxu0 %v713
    %817 = vmatprep.subr.mxu0 0.0
    %818 = vmatpush1.msra.mxu0 %v714
    %819 = vmatprep.subr.mxu0 0.0
    %820 = vmatpush1.msra.mxu0 %v715
    %821 = vmatprep.subr.mxu0 0.0
    %822 = vmatpush1.msra.mxu0 %v716
    %823 = vmatprep.subr.mxu0 0.0
    %824 = vmatpush1.msra.mxu0 %v717
    %825 = vmatprep.subr.mxu0 0.0
    %826 = vmatpush1.msra.mxu0 %v718
    %827 = vmatprep.subr.mxu0 0.0
    %828 = vmatpush1.msra.mxu0 %v719
    %829 = vmatprep.subr.mxu0 0.0
    %830 = vmatpush1.msra.mxu0 %v720
    %831 = vmatprep.subr.mxu0 0.0
    %832 = vmatpush1.msra.mxu0 %v721
    %833 = vmatprep.subr.mxu0 0.0
    %834 = vmatpush1.msra.mxu0 %v722
    %835 = vmatprep.subr.mxu0 0.0
    %836 = vmatpush1.msra.mxu0 %v723
    %837 = vmatprep.subr.mxu0 0.0
    %838 = vmatpush1.msra.mxu0 %v724
    %839 = vmatprep.subr.mxu0 0.0
    %840 = vmatpush1.msra.mxu0 %v725
    %841 = vmatprep.subr.mxu0 0.0
    %842 = vmatpush1.msra.mxu0 %v726
    %843 = vmatprep.subr.mxu0 0.0
    %844 = vmatpush1.msra.mxu0 %v727
    %845 = vmatprep.subr.mxu0 0.0
    %846 = vmatpush1.msra.mxu0 %v728
    %847 = vmatprep.subr.mxu0 0.0
    %848 = vmatpush1.msra.mxu0 0.0
    %849 = vmatprep.subr.mxu0 0.0
    %850 = vmatpush1.msra.mxu0 0.0
    %851 = vmatprep.subr.mxu0 0.0
    %852 = vmatpush1.msra.mxu0 0.0
    %853 = vmatprep.subr.mxu0 0.0
    %854 = vmatpush1.msra.mxu0 0.0
    %855 = vmatprep.subr.mxu0 0.0
    %856 = vmatpush1.msra.mxu0 0.0
    %857 = vmatprep.subr.mxu0 0.0
    %858 = vmatpush1.msra.mxu0 0.0
    %859 = vmatprep.subr.mxu0 0.0
    %860 = vmatpush1.msra.mxu0 0.0
    %861 = vmatprep.subr.mxu0 0.0
    %862 = vmatpush1.msra.mxu0 0.0
    %863 = vmatprep.subr.mxu0 0.0
    %864 = vmatpush1.msra.mxu0 0.0
    %865 = vmatprep.subr.mxu0 0.0
    %866 = vmatpush1.msra.mxu0 0.0
    %867 = vmatprep.subr.mxu0 0.0
    %868 = vmatpush1.msra.mxu0 0.0
    %869 = vmatprep.subr.mxu0 0.0
    %870 = vmatpush1.msra.mxu0 0.0
    %871 = vmatprep.subr.mxu0 0.0
    %872 = vmatpush1.msra.mxu0 0.0
    %873 = vmatprep.subr.mxu0 0.0
    %874 = vmatpush1.msra.mxu0 0.0
    %875 = vmatprep.subr.mxu0 0.0
    %876 = vmatpush1.msra.mxu0 0.0
    %877 = vmatprep.subr.mxu0 0.0
    %878 = vmatpush1.msra.mxu0 0.0
    %879 = vmatprep.mubr.f32.mxu0 0.0
    %880 = vmatmul.mubr.f32.gmra.mrb[0].mxu0 %v704
    %v881 = vpop.f32.mrb[0].mxu0
    %v882 = vadd.f32 %v812, %v881
    %v883 = vpop.f32.mrb[0].mxu0
    %884 = vdwg.mxu0
    %v885 = vld [vmem:[%s12] sm:$0x1]
    %v886 = vadd.f32 %v882, %v885
    %v887 = vmax.f32 %v886, 0.0
    %v888 = vld [vmem:[#allocation14] sm:$0xff]
    %v889 = vld [vmem:[#allocation14 + $0x8] sm:$0xff]
    %v890 = vld [vmem:[#allocation14 + $0x10] sm:$0xff]
    %v891 = vld [vmem:[#allocation14 + $0x18] sm:$0xff]
    %v892 = vld [vmem:[#allocation14 + $0x20] sm:$0xff]
    %v893 = vld [vmem:[#allocation14 + $0x28] sm:$0xff]
    %v894 = vld [vmem:[#allocation14 + $0x30] sm:$0xff]
    %v895 = vld [vmem:[#allocation14 + $0x38] sm:$0xff]
    %v896 = vld [vmem:[#allocation14 + $0x40] sm:$0xff]
    %v897 = vld [vmem:[#allocation14 + $0x48] sm:$0xff]
    %v898 = vld [vmem:[#allocation14 + $0x50] sm:$0xff]
    %v899 = vld [vmem:[#allocation14 + $0x58] sm:$0xff]
    %v900 = vld [vmem:[#allocation14 + $0x60] sm:$0xff]
    %v901 = vld [vmem:[#allocation14 + $0x68] sm:$0xff]
    %v902 = vld [vmem:[#allocation14 + $0x70] sm:$0xff]
    %v903 = vld [vmem:[#allocation14 + $0x78] sm:$0xff]
    %v904 = vld [vmem:[#allocation16] sm:$0xff]
    %v905 = vld [vmem:[#allocation16 + $0x8] sm:$0xff]
    %v906 = vld [vmem:[#allocation16 + $0x10] sm:$0xff]
    %v907 = vld [vmem:[#allocation16 + $0x18] sm:$0xff]
    %v908 = vld [vmem:[#allocation16 + $0x20] sm:$0xff]
    %v909 = vld [vmem:[#allocation16 + $0x28] sm:$0xff]
    %v910 = vld [vmem:[#allocation16 + $0x30] sm:$0xff]
    %v911 = vld [vmem:[#allocation16 + $0x38] sm:$0xff]
    %v912 = vld [vmem:[#allocation16 + $0x40] sm:$0xff]
    %v913 = vld [vmem:[#allocation16 + $0x48] sm:$0xff]
    %v914 = vld [vmem:[#allocation16 + $0x50] sm:$0xff]
    %v915 = vld [vmem:[#allocation16 + $0x58] sm:$0xff]
    %v916 = vld [vmem:[#allocation16 + $0x60] sm:$0xff]
    %v917 = vld [vmem:[#allocation16 + $0x68] sm:$0xff]
    %v918 = vld [vmem:[#allocation16 + $0x70] sm:$0xff]
    %v919 = vld [vmem:[#allocation16 + $0x78] sm:$0xff]
    %920 = vmatprep.subr.mxu0 0.0
    %921 = vmatpush1.msra.mxu0 %v904
    %922 = vmatprep.subr.mxu0 0.0
    %923 = vmatpush1.msra.mxu0 %v905
    %924 = vmatprep.subr.mxu0 0.0
    %925 = vmatpush1.msra.mxu0 %v906
    %926 = vmatprep.subr.mxu0 0.0
    %927 = vmatpush1.msra.mxu0 %v907
    %928 = vmatprep.subr.mxu0 0.0
    %929 = vmatpush1.msra.mxu0 %v908
    %930 = vmatprep.subr.mxu0 0.0
    %931 = vmatpush1.msra.mxu0 %v909
    %932 = vmatprep.subr.mxu0 0.0
    %933 = vmatpush1.msra.mxu0 %v910
    %934 = vmatprep.subr.mxu0 0.0
    %935 = vmatpush1.msra.mxu0 %v911
    %936 = vmatprep.subr.mxu0 0.0
    %937 = vmatpush1.msra.mxu0 %v912
    %938 = vmatprep.subr.mxu0 0.0
    %939 = vmatpush1.msra.mxu0 %v913
    %940 = vmatprep.subr.mxu0 0.0
    %941 = vmatpush1.msra.mxu0 %v914
    %942 = vmatprep.subr.mxu0 0.0
    %943 = vmatpush1.msra.mxu0 %v915
    %944 = vmatprep.subr.mxu0 0.0
    %945 = vmatpush1.msra.mxu0 %v916
    %946 = vmatprep.subr.mxu0 0.0
    %947 = vmatpush1.msra.mxu0 %v917
    %948 = vmatprep.subr.mxu0 0.0
    %949 = vmatpush1.msra.mxu0 %v918
    %950 = vmatprep.subr.mxu0 0.0
    %951 = vmatpush1.msra.mxu0 %v919
    %952 = vmatprep.subr.mxu0 0.0
    %953 = vmatpush1.msra.mxu0 0.0
    %954 = vmatprep.subr.mxu0 0.0
    %955 = vmatpush1.msra.mxu0 0.0
    %956 = vmatprep.subr.mxu0 0.0
    %957 = vmatpush1.msra.mxu0 0.0
    %958 = vmatprep.subr.mxu0 0.0
    %959 = vmatpush1.msra.mxu0 0.0
    %960 = vmatprep.subr.mxu0 0.0
    %961 = vmatpush1.msra.mxu0 0.0
    %962 = vmatprep.subr.mxu0 0.0
    %963 = vmatpush1.msra.mxu0 0.0
    %964 = vmatprep.subr.mxu0 0.0
    %965 = vmatpush1.msra.mxu0 0.0
    %966 = vmatprep.subr.mxu0 0.0
    %967 = vmatpush1.msra.mxu0 0.0
    %968 = vmatprep.subr.mxu0 0.0
    %969 = vmatpush1.msra.mxu0 0.0
    %970 = vmatprep.subr.mxu0 0.0
    %971 = vmatpush1.msra.mxu0 0.0
    %972 = vmatprep.subr.mxu0 0.0
    %973 = vmatpush1.msra.mxu0 0.0
    %974 = vmatprep.subr.mxu0 0.0
    %975 = vmatpush1.msra.mxu0 0.0
    %976 = vmatprep.subr.mxu0 0.0
    %977 = vmatpush1.msra.mxu0 0.0
    %978 = vmatprep.subr.mxu0 0.0
    %979 = vmatpush1.msra.mxu0 0.0
    %980 = vmatprep.subr.mxu0 0.0
    %981 = vmatpush1.msra.mxu0 0.0
    %982 = vmatprep.subr.mxu0 0.0
    %983 = vmatpush1.msra.mxu0 0.0
    %984 = vmatprep.mubr.f32.mxu0 0.0
    %985 = vmatmul.mubr.f32.gmra.mrb[0].mxu0 %v695
    %v986 = vpop.f32.mrb[0].mxu0
    %v987 = vadd.f32 0.0, %v986
    %v988 = vpop.f32.mrb[0].mxu0
    %989 = vdwg.mxu0
    %990 = vmatprep.subr.mxu0 0.0
    %991 = vmatpush1.msra.mxu0 %v888
    %992 = vmatprep.subr.mxu0 0.0
    %993 = vmatpush1.msra.mxu0 %v889
    %994 = vmatprep.subr.mxu0 0.0
    %995 = vmatpush1.msra.mxu0 %v890
    %996 = vmatprep.subr.mxu0 0.0
    %997 = vmatpush1.msra.mxu0 %v891
    %998 = vmatprep.subr.mxu0 0.0
    %999 = vmatpush1.msra.mxu0 %v892
    %1000 = vmatprep.subr.mxu0 0.0
    %1001 = vmatpush1.msra.mxu0 %v893
    %1002 = vmatprep.subr.mxu0 0.0
    %1003 = vmatpush1.msra.mxu0 %v894
    %1004 = vmatprep.subr.mxu0 0.0
    %1005 = vmatpush1.msra.mxu0 %v895
    %1006 = vmatprep.subr.mxu0 0.0
    %1007 = vmatpush1.msra.mxu0 %v896
    %1008 = vmatprep.subr.mxu0 0.0
    %1009 = vmatpush1.msra.mxu0 %v897
    %1010 = vmatprep.subr.mxu0 0.0
    %1011 = vmatpush1.msra.mxu0 %v898
    %1012 = vmatprep.subr.mxu0 0.0
    %1013 = vmatpush1.msra.mxu0 %v899
    %1014 = vmatprep.subr.mxu0 0.0
    %1015 = vmatpush1.msra.mxu0 %v900
    %1016 = vmatprep.subr.mxu0 0.0
    %1017 = vmatpush1.msra.mxu0 %v901
    %1018 = vmatprep.subr.mxu0 0.0
    %1019 = vmatpush1.msra.mxu0 %v902
    %1020 = vmatprep.subr.mxu0 0.0
    %1021 = vmatpush1.msra.mxu0 %v903
    %1022 = vmatprep.subr.mxu0 0.0
    %1023 = vmatpush1.msra.mxu0 0.0
    %1024 = vmatprep.subr.mxu0 0.0
    %1025 = vmatpush1.msra.mxu0 0.0
    %1026 = vmatprep.subr.mxu0 0.0
    %1027 = vmatpush1.msra.mxu0 0.0
    %1028 = vmatprep.subr.mxu0 0.0
    %1029 = vmatpush1.msra.mxu0 0.0
    %1030 = vmatprep.subr.mxu0 0.0
    %1031 = vmatpush1.msra.mxu0 0.0
    %1032 = vmatprep.subr.mxu0 0.0
    %1033 = vmatpush1.msra.mxu0 0.0
    %1034 = vmatprep.subr.mxu0 0.0
    %1035 = vmatpush1.msra.mxu0 0.0
    %1036 = vmatprep.subr.mxu0 0.0
    %1037 = vmatpush1.msra.mxu0 0.0
    %1038 = vmatprep.subr.mxu0 0.0
    %1039 = vmatpush1.msra.mxu0 0.0
    %1040 = vmatprep.subr.mxu0 0.0
    %1041 = vmatpush1.msra.mxu0 0.0
    %1042 = vmatprep.subr.mxu0 0.0
    %1043 = vmatpush1.msra.mxu0 0.0
    %1044 = vmatprep.subr.mxu0 0.0
    %1045 = vmatpush1.msra.mxu0 0.0
    %1046 = vmatprep.subr.mxu0 0.0
    %1047 = vmatpush1.msra.mxu0 0.0
    %1048 = vmatprep.subr.mxu0 0.0
    %1049 = vmatpush1.msra.mxu0 0.0
    %1050 = vmatprep.subr.mxu0 0.0
    %1051 = vmatpush1.msra.mxu0 0.0
    %1052 = vmatprep.subr.mxu0 0.0
    %1053 = vmatpush1.msra.mxu0 0.0
    %1054 = vmatprep.mubr.f32.mxu0 0.0
    %1055 = vmatmul.mubr.f32.gmra.mrb[0].mxu0 %v518
    %v1056 = vpop.f32.mrb[0].mxu0
    %v1057 = vadd.f32 %v987, %v1056
    %v1058 = vpop.f32.mrb[0].mxu0
    %1059 = vdwg.mxu0
    %v1060 = vld [vmem:[#allocation17] sm:$0xff]
    %v1061 = vld [vmem:[#allocation17 + $0x8] sm:$0xff]
    %v1062 = vld [vmem:[#allocation17 + $0x10] sm:$0xff]
    %v1063 = vld [vmem:[#allocation17 + $0x18] sm:$0xff]
    %v1064 = vld [vmem:[#allocation17 + $0x20] sm:$0xff]
    %v1065 = vld [vmem:[#allocation17 + $0x28] sm:$0xff]
    %v1066 = vld [vmem:[#allocation17 + $0x30] sm:$0xff]
    %v1067 = vld [vmem:[#allocation17 + $0x38] sm:$0xff]
    %v1068 = vld [vmem:[#allocation17 + $0x40] sm:$0xff]
    %v1069 = vld [vmem:[#allocation17 + $0x48] sm:$0xff]
    %v1070 = vld [vmem:[#allocation17 + $0x50] sm:$0xff]
    %v1071 = vld [vmem:[#allocation17 + $0x58] sm:$0xff]
    %v1072 = vld [vmem:[#allocation17 + $0x60] sm:$0xff]
    %v1073 = vld [vmem:[#allocation17 + $0x68] sm:$0xff]
    %v1074 = vld [vmem:[#allocation17 + $0x70] sm:$0xff]
    %v1075 = vld [vmem:[#allocation17 + $0x78] sm:$0xff]
    %1076 = vmatprep.subr.mxu0 0.0
    %1077 = vmatpush1.msra.mxu0 %v1060
    %1078 = vmatprep.subr.mxu0 0.0
    %1079 = vmatpush1.msra.mxu0 %v1061
    %1080 = vmatprep.subr.mxu0 0.0
    %1081 = vmatpush1.msra.mxu0 %v1062
    %1082 = vmatprep.subr.mxu0 0.0
    %1083 = vmatpush1.msra.mxu0 %v1063
    %1084 = vmatprep.subr.mxu0 0.0
    %1085 = vmatpush1.msra.mxu0 %v1064
    %1086 = vmatprep.subr.mxu0 0.0
    %1087 = vmatpush1.msra.mxu0 %v1065
    %1088 = vmatprep.subr.mxu0 0.0
    %1089 = vmatpush1.msra.mxu0 %v1066
    %1090 = vmatprep.subr.mxu0 0.0
    %1091 = vmatpush1.msra.mxu0 %v1067
    %1092 = vmatprep.subr.mxu0 0.0
    %1093 = vmatpush1.msra.mxu0 %v1068
    %1094 = vmatprep.subr.mxu0 0.0
    %1095 = vmatpush1.msra.mxu0 %v1069
    %1096 = vmatprep.subr.mxu0 0.0
    %1097 = vmatpush1.msra.mxu0 %v1070
    %1098 = vmatprep.subr.mxu0 0.0
    %1099 = vmatpush1.msra.mxu0 %v1071
    %1100 = vmatprep.subr.mxu0 0.0
    %1101 = vmatpush1.msra.mxu0 %v1072
    %1102 = vmatprep.subr.mxu0 0.0
    %1103 = vmatpush1.msra.mxu0 %v1073
    %1104 = vmatprep.subr.mxu0 0.0
    %1105 = vmatpush1.msra.mxu0 %v1074
    %1106 = vmatprep.subr.mxu0 0.0
    %1107 = vmatpush1.msra.mxu0 %v1075
    %1108 = vmatprep.subr.mxu0 0.0
    %1109 = vmatpush1.msra.mxu0 0.0
    %1110 = vmatprep.subr.mxu0 0.0
    %1111 = vmatpush1.msra.mxu0 0.0
    %1112 = vmatprep.subr.mxu0 0.0
    %1113 = vmatpush1.msra.mxu0 0.0
    %1114 = vmatprep.subr.mxu0 0.0
    %1115 = vmatpush1.msra.mxu0 0.0
    %1116 = vmatprep.subr.mxu0 0.0
    %1117 = vmatpush1.msra.mxu0 0.0
    %1118 = vmatprep.subr.mxu0 0.0
    %1119 = vmatpush1.msra.mxu0 0.0
    %1120 = vmatprep.subr.mxu0 0.0
    %1121 = vmatpush1.msra.mxu0 0.0
    %1122 = vmatprep.subr.mxu0 0.0
    %1123 = vmatpush1.msra.mxu0 0.0
    %1124 = vmatprep.subr.mxu0 0.0
    %1125 = vmatpush1.msra.mxu0 0.0
    %1126 = vmatprep.subr.mxu0 0.0
    %1127 = vmatpush1.msra.mxu0 0.0
    %1128 = vmatprep.subr.mxu0 0.0
    %1129 = vmatpush1.msra.mxu0 0.0
    %1130 = vmatprep.subr.mxu0 0.0
    %1131 = vmatpush1.msra.mxu0 0.0
    %1132 = vmatprep.subr.mxu0 0.0
    %1133 = vmatpush1.msra.mxu0 0.0
    %1134 = vmatprep.subr.mxu0 0.0
    %1135 = vmatpush1.msra.mxu0 0.0
    %1136 = vmatprep.subr.mxu0 0.0
    %1137 = vmatpush1.msra.mxu0 0.0
    %1138 = vmatprep.subr.mxu0 0.0
    %1139 = vmatpush1.msra.mxu0 0.0
    %1140 = vmatprep.mubr.f32.mxu0 0.0
    %1141 = vmatmul.mubr.f32.gmra.mrb[0].mxu0 %v887
    %v1142 = vpop.f32.mrb[0].mxu0
    %v1143 = vadd.f32 0.0, %v1142
    %v1144 = vpop.f32.mrb[0].mxu0
    %1145 = vdwg.mxu0
    %v1146 = vlaneseq
    %v1147 = vshrl.u32 %v1146, 7
    %v1148 = vsub.s32 0, %v1147
    %v1149 = vrot.slane %v1143, %v1148
    %v1150 = vadd.f32 %v1057, %v1149
    %v1151 = vld [vmem:[%s16] sm:$0x1]
    %v1153 = vlaneseq
    %v1154 = vshrl.u32 %v1153, 7
    %v1155 = vsub.s32 0, %v1154
    %v1156 = vrot.slane %v1151, %v1155
    %v1158 = vadd.f32 %v1150, %v1156
    %v1159 = vmax.f32 %v1158, 0.0
    %v1160 = vld [vmem:[#allocation19] sm:$0xff]
    %v1161 = vld [vmem:[#allocation19 + $0x8] sm:$0xff]
    %v1162 = vld [vmem:[#allocation19 + $0x10] sm:$0xff]
    %v1163 = vld [vmem:[#allocation19 + $0x18] sm:$0xff]
    %v1164 = vld [vmem:[#allocation19 + $0x20] sm:$0xff]
    %v1165 = vld [vmem:[#allocation19 + $0x28] sm:$0xff]
    %v1166 = vld [vmem:[#allocation19 + $0x30] sm:$0xff]
    %v1167 = vld [vmem:[#allocation19 + $0x38] sm:$0xff]
    %v1168 = vld [vmem:[#allocation19 + $0x40] sm:$0xff]
    %v1169 = vld [vmem:[#allocation19 + $0x48] sm:$0xff]
    %v1170 = vld [vmem:[#allocation19 + $0x50] sm:$0xff]
    %v1171 = vld [vmem:[#allocation19 + $0x58] sm:$0xff]
    %v1172 = vld [vmem:[#allocation19 + $0x60] sm:$0xff]
    %v1173 = vld [vmem:[#allocation19 + $0x68] sm:$0xff]
    %v1174 = vld [vmem:[#allocation19 + $0x70] sm:$0xff]
    %v1175 = vld [vmem:[#allocation19 + $0x78] sm:$0xff]
    %v1176 = vld [vmem:[%s18] sm:$0x1]
    %v1178 = vlaneseq
    %v1179 = vshrl.u32 %v1178, 7
    %v1180 = vsub.s32 0, %v1179
    %v1181 = vrot.slane %v1176, %v1180
    %1183 = vmatprep.subr.mxu0 0.0
    %1184 = vmatpush1.msra.mxu0 %v1160
    %1185 = vmatprep.subr.mxu0 0.0
    %1186 = vmatpush1.msra.mxu0 %v1161
    %1187 = vmatprep.subr.mxu0 0.0
    %1188 = vmatpush1.msra.mxu0 %v1162
    %1189 = vmatprep.subr.mxu0 0.0
    %1190 = vmatpush1.msra.mxu0 %v1163
    %1191 = vmatprep.subr.mxu0 0.0
    %1192 = vmatpush1.msra.mxu0 %v1164
    %1193 = vmatprep.subr.mxu0 0.0
    %1194 = vmatpush1.msra.mxu0 %v1165
    %1195 = vmatprep.subr.mxu0 0.0
    %1196 = vmatpush1.msra.mxu0 %v1166
    %1197 = vmatprep.subr.mxu0 0.0
    %1198 = vmatpush1.msra.mxu0 %v1167
    %1199 = vmatprep.subr.mxu0 0.0
    %1200 = vmatpush1.msra.mxu0 %v1168
    %1201 = vmatprep.subr.mxu0 0.0
    %1202 = vmatpush1.msra.mxu0 %v1169
    %1203 = vmatprep.subr.mxu0 0.0
    %1204 = vmatpush1.msra.mxu0 %v1170
    %1205 = vmatprep.subr.mxu0 0.0
    %1206 = vmatpush1.msra.mxu0 %v1171
    %1207 = vmatprep.subr.mxu0 0.0
    %1208 = vmatpush1.msra.mxu0 %v1172
    %1209 = vmatprep.subr.mxu0 0.0
    %1210 = vmatpush1.msra.mxu0 %v1173
    %1211 = vmatprep.subr.mxu0 0.0
    %1212 = vmatpush1.msra.mxu0 %v1174
    %1213 = vmatprep.subr.mxu0 0.0
    %1214 = vmatpush1.msra.mxu0 %v1175
    %1215 = vmatprep.subr.mxu0 0.0
    %1216 = vmatpush1.msra.mxu0 0.0
    %1217 = vmatprep.subr.mxu0 0.0
    %1218 = vmatpush1.msra.mxu0 0.0
    %1219 = vmatprep.subr.mxu0 0.0
    %1220 = vmatpush1.msra.mxu0 0.0
    %1221 = vmatprep.subr.mxu0 0.0
    %1222 = vmatpush1.msra.mxu0 0.0
    %1223 = vmatprep.subr.mxu0 0.0
    %1224 = vmatpush1.msra.mxu0 0.0
    %1225 = vmatprep.subr.mxu0 0.0
    %1226 = vmatpush1.msra.mxu0 0.0
    %1227 = vmatprep.subr.mxu0 0.0
    %1228 = vmatpush1.msra.mxu0 0.0
    %1229 = vmatprep.subr.mxu0 0.0
    %1230 = vmatpush1.msra.mxu0 0.0
    %1231 = vmatprep.subr.mxu0 0.0
    %1232 = vmatpush1.msra.mxu0 0.0
    %1233 = vmatprep.subr.mxu0 0.0
    %1234 = vmatpush1.msra.mxu0 0.0
    %1235 = vmatprep.subr.mxu0 0.0
    %1236 = vmatpush1.msra.mxu0 0.0
    %1237 = vmatprep.subr.mxu0 0.0
    %1238 = vmatpush1.msra.mxu0 0.0
    %1239 = vmatprep.subr.mxu0 0.0
    %1240 = vmatpush1.msra.mxu0 0.0
    %1241 = vmatprep.subr.mxu0 0.0
    %1242 = vmatpush1.msra.mxu0 0.0
    %1243 = vmatprep.subr.mxu0 0.0
    %1244 = vmatpush1.msra.mxu0 0.0
    %1245 = vmatprep.subr.mxu0 0.0
    %1246 = vmatpush1.msra.mxu0 0.0
    %1247 = vmatprep.mubr.f32.mxu0 0.0
    %1248 = vmatmul.mubr.f32.gmra.mrb[0].mxu0 %v1159
    %v1249 = vpop.f32.mrb[0].mxu0
    %v1250 = vadd.f32 %v1181, %v1249
    %v1251 = vpop.f32.mrb[0].mxu0
    %1252 = vdwg.mxu0
    %1253 = vst [vmem:[#allocation20] sm:$0xff] %v476
    %1254 = vst [vmem:[#allocation20 + $0x8] sm:$0xff] %v477
    %1255 = vst [vmem:[#allocation21] sm:$0xff] %v1250
    %1256 = vst [vmem:[#allocation23] sm:$0x1] %v887
    // Predicated region
    $region122: #{tpu_custom_call.1} parent=1 // pred_check
      _
    $region123: #{tpu_custom_call.1} parent=1 // pred_check_branch
      %1258 = sbr.rel (0) target = $region125
    $region124: #{tpu_custom_call.1} parent=1 // pred_region
      %s1260 = ssub.s32 256, 256
      %1261 = vsyncadd [#allocation4], %s1260
      %s1262 = sshll.u32 [#allocation20], 4
      %s1263 = int_to_ptr.vmem [resolvable:$true] %s1262
      %1268 = dma.vmem_to_hbm [thread:$0]  %s1263, 256, %s19, [#allocation4], 128, 128, 8
    $region125: #{tpu_custom_call.1} parent=1 // pred_fallthru
      _
    // Predicated region
    $region126: #{tpu_custom_call.1} parent=1 // pred_check
      _
    $region127: #{tpu_custom_call.1} parent=1 // pred_check_branch
      %1270 = sbr.rel (0) target = $region129
    $region128: #{tpu_custom_call.1} parent=1 // pred_region
      %s1272 = ssub.s32 128, 128
      %1273 = vsyncadd [#allocation22], %s1272
      %s1275 = sshll.u32 [#allocation21], 4
      %s1276 = int_to_ptr.vmem [resolvable:$true] %s1275
      %1278 = dma.vmem_to_hbm [thread:$0]  %s1276, 128, %s20, [#allocation22]
    $region129: #{tpu_custom_call.1} parent=1 // pred_fallthru
      _
    // Predicated region
    $region130: #{tpu_custom_call.1} parent=1 // pred_check
      _
    $region131: #{tpu_custom_call.1} parent=1 // pred_check_branch
      %1280 = sbr.rel (0) target = $region133
    $region132: #{tpu_custom_call.1} parent=1 // pred_region
      %s1282 = ssub.s32 16, 16
      %1283 = vsyncadd [#allocation22], %s1282
      %s1285 = sshll.u32 [#allocation23], 4
      %s1286 = int_to_ptr.vmem [resolvable:$true] %s1285
      %1288 = dma.vmem_to_hbm [thread:$0]  %s1286, 16, %s21, [#allocation22]
    $region133: #{tpu_custom_call.1} parent=1 // pred_fallthru
      _
    // Predicated region
    $region134: #{tpu_custom_call.1} parent=1 // pred_check
      _
    $region135: #{tpu_custom_call.1} parent=1 // pred_check_branch
      %1290 = sbr.rel (0) target = $region137
    $region136: #{tpu_custom_call.1} parent=1 // pred_region
      %1291 = dma.done [#allocation4], 256
    $region137: #{tpu_custom_call.1} parent=1 // pred_fallthru
      _
    // Predicated region
    $region138: #{tpu_custom_call.1} parent=1 // pred_check
      _
    $region139: #{tpu_custom_call.1} parent=1 // pred_check_branch
      %1293 = sbr.rel (0) target = $region141
    $region140: #{tpu_custom_call.1} parent=1 // pred_region
      %1294 = dma.done [#allocation22], 128
    $region141: #{tpu_custom_call.1} parent=1 // pred_fallthru
      _
    // Predicated region
    $region142: #{tpu_custom_call.1} parent=1 // pred_check
      _
    $region143: #{tpu_custom_call.1} parent=1 // pred_check_branch
      %1296 = sbr.rel (0) target = $region145
    $region144: #{tpu_custom_call.1} parent=1 // pred_region
      %1297 = dma.done [#allocation22], 16
    $region145: #{tpu_custom_call.1} parent=1 // pred_fallthru
      _
    %1298 = vsyncpa [#allocation3], 1
    %1299 = vsyncpa [#allocation6], 1
    %1300 = vsyncpa [#allocation9], 1
    %1301 = vsyncpa [#allocation12], 1
    %1302 = vsyncpa [#allocation15], 1
    %1303 = vsyncpa [#allocation18], 1
    %1304 = vsyncpa [#allocation4], 1
    %1305 = vsyncpa [#allocation22], 1

</llo_original>
